<compile_context>
chip_gen: v5e
topology: v5e:2x2
jax: 0.10.0
libtpu: 0.0.40
codegen_flags: <defaults>
</compile_context>

<pallas_src>
import functools
import math

import jax
import jax.numpy as jnp
from jax.experimental import pallas as pl
from jax.experimental.pallas import tpu as pltpu

# Small synthetic RoBERTa-style config (same forward semantics, tiny sizes).
CFG = dict(
    vocab=64,        # vocab_size
    hidden=32,       # hidden_size
    layers=2,        # num_hidden_layers
    heads=4,         # num_attention_heads
    inter=64,        # intermediate_size
    max_pos=24,      # max_position_embeddings
    type_vocab=1,    # type_vocab_size
    head_hidden=100, # n_last_hidden_units
    pad_token_id=1,  # roberta padding idx
    eps=1e-5,        # layer_norm_eps
)


# ----------------------------- fused encoder + head kernel -----------------------------

def _fused_kernel(B, S, H, nh, hd, eps,
                  emb_ref, mask_ref, hmask_ref, eg_ref, eb_ref,
                  hw1_ref, hb1_ref, hw2_ref, hb2_ref,
                  wqkv_ref, bqkv_ref, wo_ref, bo_ref, ln1g_ref, ln1b_ref,
                  wi_ref, bi_ref, wf_ref, bf_ref, ln2g_ref, ln2b_ref,
                  out_ref, x_sc):
    """One grid step == one transformer layer; x_sc keeps the [M,H] activation VMEM-resident.
    The last step additionally does the FIRST_TOKEN pick and the regression head."""
    l = pl.program_id(0)
    scale = 1.0 / math.sqrt(hd)

    def layernorm(h, g, b):
        mu = jnp.mean(h, axis=-1, keepdims=True)
        var = jnp.mean((h - mu) ** 2, axis=-1, keepdims=True)
        return (h - mu) * jax.lax.rsqrt(var + eps) * g + b

    # layer 0: embedding LayerNorm seeds the resident activation.
    @pl.when(l == 0)
    def _():
        x_sc[...] = layernorm(emb_ref[...], eg_ref[...], eb_ref[...])

    x = x_sc[...]                                   # [B*S, H] f32
    xb = x.astype(jnp.bfloat16)

    # fused QKV projection: one MXU pass over x (bf16 operands, f32 accumulation).
    qkv = jnp.dot(xb, wqkv_ref[...], preferred_element_type=jnp.float32) + bqkv_ref[...]
    q = qkv[:, 0 * H:1 * H]
    k = qkv[:, 1 * H:2 * H]
    v = qkv[:, 2 * H:3 * H]

    contract = (((1,), (1,)), ((), ()))             # contract last dims, no batch dims

    # per-head lane masks come in as a constant [nh, H] input (hoisted out of the layer body).
    # TODO(synk): at H>=128 / nh>=12 replace the lane-masked full-H contraction with true
    #             per-head [S,hd] matmuls (nh-times fewer MXU FLOPs); neutral at this toy H=32.
    ctx_rows = []
    for b in range(B):                              # tiny static loops (B*nh = 8)
        r0 = b * S
        qb = q[r0:r0 + S, :]                        # f32
        kbb = k[r0:r0 + S, :].astype(jnp.bfloat16)
        vb = v[r0:r0 + S, :]                        # f32
        mb = mask_ref[b:b + 1, :]                   # [1, S] additive mask, broadcast over rows
        ctx_b = jnp.zeros((S, H), jnp.float32)
        for h in range(nh):
            hm = hmask_ref[h:h + 1, :]              # [1, H] 0/1 lane mask for head h
            # (Q*hm) . K over full H == Q_h @ K_h^T (zeroed lanes contribute nothing); bf16 MXU.
            qh = (qb * hm).astype(jnp.bfloat16)
            s = jax.lax.dot_general(qh, kbb, contract,
                                    preferred_element_type=jnp.float32)
            s = s * scale + mb
            s = s - jnp.max(s, axis=-1, keepdims=True)
            p = jnp.exp(s)
            p = p * pl.reciprocal(jnp.sum(p, axis=-1, keepdims=True), approx=True)
            # P_h @ (V masked to head h) lands directly in head h's lane block of ctx; bf16 MXU.
            vh = (vb * hm).astype(jnp.bfloat16)
            ctx_b = ctx_b + jnp.dot(p.astype(jnp.bfloat16), vh,
                                    preferred_element_type=jnp.float32)
        ctx_rows.append(ctx_b)
    ctx = jnp.concatenate(ctx_rows, axis=0)         # [B*S, H] (sublane-aligned concat)

    attn = jnp.dot(ctx.astype(jnp.bfloat16), wo_ref[...],
                   preferred_element_type=jnp.float32) + bo_ref[...]
    x1 = layernorm(attn + x, ln1g_ref[...], ln1b_ref[...])

    inter = jnp.dot(x1.astype(jnp.bfloat16), wi_ref[...],
                    preferred_element_type=jnp.float32) + bi_ref[...]
    # TODO(synk): HF roberta uses exact erf-gelu; tanh approximation used here.
    inter = jax.nn.gelu(inter, approximate=True)
    ffn = jnp.dot(inter.astype(jnp.bfloat16), wf_ref[...],
                  preferred_element_type=jnp.float32) + bf_ref[...]
    new_x = layernorm(ffn + x1, ln2g_ref[...], ln2b_ref[...])
    x_sc[...] = new_x                               # only VMEM write per layer (no HBM store)

    # last layer: FIRST_TOKEN pick + regression head, fused (only [B,1] ever leaves the kernel).
    @pl.when(l == pl.num_programs(0) - 1)
    def _():
        feat = jnp.concatenate([new_x[b * S:b * S + 1, :] for b in range(B)], axis=0)  # [B, H]
        h1 = jnp.dot(feat, hw1_ref[...], preferred_element_type=jnp.float32) + hb1_ref[...]
        h1 = jnp.maximum(h1, 0.0)
        # final Linear(head_hidden, 1) as a VPU row-reduction (no N=1 MXU matmul).
        out_ref[...] = jnp.sum(h1 * hw2_ref[...], axis=-1, keepdims=True) + hb2_ref[...]


def fused_forward(emb, add_mask, head_mask, params, cfg):
    """Embedding-LN + all transformer layers + FIRST_TOKEN + MLP head in one pallas_call."""
    M, H = emb.shape
    B, S = add_mask.shape
    L, nh, I = cfg['layers'], cfg['heads'], cfg['inter']
    hd = H // nh
    HHp = params['head_w1'].shape[1]

    c2 = lambda l: (0, 0)              # constant inputs: same block every layer (stay resident)
    c3 = lambda l: (l, 0, 0)           # stacked per-layer weights: layer l (pipelined DMA)

    # TODO(synk): emb stays VMEM-resident for the whole grid although only read at l==0;
    #             acceptable at toy shapes, revisit for v7x (64 MiB VMEM) at production shapes.
    kernel = functools.partial(_fused_kernel, B, S, H, nh, hd, cfg['eps'])
    return pl.pallas_call(
        kernel,
        out_shape=jax.ShapeDtypeStruct((B, 1), jnp.float32),
        grid_spec=pltpu.PrefetchScalarGridSpec(
            num_scalar_prefetch=0,
            grid=(L,),
            in_specs=[
                pl.BlockSpec((M, H), c2),                # embeddings
                pl.BlockSpec((B, S), c2),                # additive attention mask [B, S]
                pl.BlockSpec((nh, H), c2),               # constant per-head lane masks
                pl.BlockSpec((1, H), c2),                # emb LN gamma
                pl.BlockSpec((1, H), c2),                # emb LN beta
                pl.BlockSpec((H, HHp), c2),              # head w1 (100 lanes zero-padded to 128)
                pl.BlockSpec((1, HHp), c2),              # head b1
                pl.BlockSpec((1, HHp), c2),              # head w2 (row vector)
                pl.BlockSpec((1, 1), c2),                # head b2
                pl.BlockSpec((None, H, 3 * H), c3),      # wqkv (bf16)
                pl.BlockSpec((None, 1, 3 * H), c3),      # bqkv
                pl.BlockSpec((None, H, H), c3),          # wo (bf16)
                pl.BlockSpec((None, 1, H), c3),          # bo
                pl.BlockSpec((None, 1, H), c3),          # ln1 gamma
                pl.BlockSpec((None, 1, H), c3),          # ln1 beta
                pl.BlockSpec((None, H, I), c3),          # wi (bf16)
                pl.BlockSpec((None, 1, I), c3),          # bi
                pl.BlockSpec((None, I, H), c3),          # wf (bf16)
                pl.BlockSpec((None, 1, H), c3),          # bf
                pl.BlockSpec((None, 1, H), c3),          # ln2 gamma
                pl.BlockSpec((None, 1, H), c3),          # ln2 beta
            ],
            out_specs=pl.BlockSpec((B, 1), c2),
            scratch_shapes=[pltpu.VMEM((M, H), jnp.float32)],   # the ONLY activation buffer
        ),
        compiler_params=pltpu.CompilerParams(
            dimension_semantics=("arbitrary",)),         # layers are sequential
    )(emb, add_mask, head_mask,
      params['emb_ln_g'], params['emb_ln_b'],
      params['head_w1'], params['head_b1'], params['head_w2'], params['head_b2'],
      params['wqkv'], params['bqkv'], params['wo'], params['bo'],
      params['ln1_g'], params['ln1_b'], params['wi'], params['bi'],
      params['wf'], params['bf'], params['ln2_g'], params['ln2_b'])


# ------------------------------ parameters ------------------------------

def init_params(key, cfg):
    H, I, L = cfg['hidden'], cfg['inter'], cfg['layers']
    HHp = ((cfg['head_hidden'] + 127) // 128) * 128     # pad head hidden 100 -> 128 lanes

    def norm(k, shape):
        return 0.02 * jax.random.normal(k, shape, jnp.float32)

    keys = jax.random.split(key, 10)
    word_emb = norm(keys[0], (cfg['vocab'], H)).at[cfg['pad_token_id']].set(0.0)
    pos_emb = norm(keys[1], (cfg['max_pos'], H)).at[cfg['pad_token_id']].set(0.0)
    p = {
        'word_emb': word_emb,                            # padding_idx row zeroed (torch init)
        'pos_emb':  pos_emb,
        'type_emb': norm(keys[2], (cfg['type_vocab'], H)),
        'emb_ln_g': jnp.ones((1, H), jnp.float32),
        'emb_ln_b': jnp.zeros((1, H), jnp.float32),
        # stacked per-layer weights [L, ...]; matmul weights in bf16 for the MXU.
        'wqkv': norm(keys[3], (L, H, 3 * H)).astype(jnp.bfloat16),
        'bqkv': jnp.zeros((L, 1, 3 * H), jnp.float32),
        'wo':   norm(keys[4], (L, H, H)).astype(jnp.bfloat16),
        'bo':   jnp.zeros((L, 1, H), jnp.float32),
        'ln1_g': jnp.ones((L, 1, H), jnp.float32),
        'ln1_b': jnp.zeros((L, 1, H), jnp.float32),
        'wi':   norm(keys[5], (L, H, I)).astype(jnp.bfloat16),
        'bi':   jnp.zeros((L, 1, I), jnp.float32),
        'wf':   norm(keys[6], (L, I, H)).astype(jnp.bfloat16),
        'bf':   jnp.zeros((L, 1, H), jnp.float32),
        'ln2_g': jnp.ones((L, 1, H), jnp.float32),
        'ln2_b': jnp.zeros((L, 1, H), jnp.float32),
    }
    # head: Linear(H,100) -> ReLU -> Linear(100,1); zero-padding 100 -> 128 lanes is exact.
    w1 = norm(keys[7], (H, cfg['head_hidden']))
    w2 = norm(keys[8], (cfg['head_hidden'], 1))
    p['head_w1'] = jnp.pad(w1, ((0, 0), (0, HHp - cfg['head_hidden'])))
    p['head_b1'] = jnp.zeros((1, HHp), jnp.float32)
    p['head_w2'] = jnp.pad(w2.T, ((0, 0), (0, HHp - cfg['head_hidden'])))   # [1, HHp]
    p['head_b2'] = jnp.zeros((1, 1), jnp.float32)
    return p


# ------------------------------ forward pass ------------------------------

def roberta_regressor_forward(params, input_ids, attention_mask, cfg):
    B, S = input_ids.shape
    H, nh = cfg['hidden'], cfg['heads']
    hd = H // nh
    pad = cfg['pad_token_id']

    # --- embeddings (gathers in JAX glue; LayerNorm fused into the encoder kernel) ---
    # TODO(synk): token/position gathers kept as XLA gathers (no clean tiny-scale Pallas equivalent).
    nonpad = (input_ids != pad).astype(jnp.int32)
    pos_ids = jnp.cumsum(nonpad, axis=1) * nonpad + pad       # roberta position ids
    emb = (jnp.take(params['word_emb'], input_ids, axis=0)
           + jnp.take(params['pos_emb'], pos_ids, axis=0)
           + params['type_emb'][0][None, None, :])
    emb = emb.reshape(B * S, H).astype(jnp.float32)
    # dropout probs are set to 0 in the module -> no dropout.

    # additive attention mask, kept compact at [B, S]; broadcast per-batch inside the kernel.
    add_mask = (1.0 - attention_mask.astype(jnp.float32)) * -1e9          # [B, S]

    # constant per-head lane masks [nh, H] (computed once, not per layer inside the kernel).
    head_mask = (jnp.arange(H, dtype=jnp.int32)[None, :] // hd
                 == jnp.arange(nh, dtype=jnp.int32)[:, None]).astype(jnp.float32)

    # encoder + FIRST_TOKEN reduction + regression head, all fused in one pallas_call.
    # (feat.squeeze(1) in torch is a no-op for H > 1.)
    return fused_forward(emb, add_mask, head_mask, params, cfg)


# ---------------------------------- main ----------------------------------

if __name__ == "__main__":
    cfg = CFG
    B, S = 2, 8
    key = jax.random.PRNGKey(0)
    k_param, k_ids = jax.random.split(key)

    params = init_params(k_param, cfg)

    input_ids = jax.random.randint(k_ids, (B, S), 3, cfg['vocab'], dtype=jnp.int32)
    input_ids = input_ids.at[:, 0].set(0)                     # BOS token
    input_ids = input_ids.at[1, 6:].set(cfg['pad_token_id'])  # pad tail of example 1
    attention_mask = (input_ids != cfg['pad_token_id']).astype(jnp.int32)

    fwd = jax.jit(functools.partial(roberta_regressor_forward, cfg=cfg))
    out = fwd(params, input_ids, attention_mask)
    jax.block_until_ready(out)

    assert out.shape == (B, 1) and out.dtype == jnp.float32
    print("KERNEL_OK")
</pallas_src>

<mosaic_0001>
module attributes {stable_mosaic.version = 11 : i64} {
  func.func @_fused_kernel(%arg0: i32, %arg1: memref<16x32xf32, #tpu.memory_space<vmem>>, %arg2: memref<2x8xf32, #tpu.memory_space<vmem>>, %arg3: memref<4x32xf32, #tpu.memory_space<vmem>>, %arg4: memref<1x32xf32, #tpu.memory_space<vmem>>, %arg5: memref<1x32xf32, #tpu.memory_space<vmem>>, %arg6: memref<32x128xf32, #tpu.memory_space<vmem>>, %arg7: memref<1x128xf32, #tpu.memory_space<vmem>>, %arg8: memref<1x128xf32, #tpu.memory_space<vmem>>, %arg9: memref<1x1xf32, #tpu.memory_space<vmem>>, %arg10: memref<1x32x96xbf16, #tpu.memory_space<vmem>>, %arg11: memref<1x1x96xf32, #tpu.memory_space<vmem>>, %arg12: memref<1x32x32xbf16, #tpu.memory_space<vmem>>, %arg13: memref<1x1x32xf32, #tpu.memory_space<vmem>>, %arg14: memref<1x1x32xf32, #tpu.memory_space<vmem>>, %arg15: memref<1x1x32xf32, #tpu.memory_space<vmem>>, %arg16: memref<1x32x64xbf16, #tpu.memory_space<vmem>>, %arg17: memref<1x1x64xf32, #tpu.memory_space<vmem>>, %arg18: memref<1x64x32xbf16, #tpu.memory_space<vmem>>, %arg19: memref<1x1x32xf32, #tpu.memory_space<vmem>>, %arg20: memref<1x1x32xf32, #tpu.memory_space<vmem>>, %arg21: memref<1x1x32xf32, #tpu.memory_space<vmem>>, %arg22: memref<2x1xf32, #tpu.memory_space<vmem>>, %arg23: memref<16x32xf32, #tpu.memory_space<vmem>>) attributes {dimension_semantics = [#tpu.dimension_semantics<arbitrary>], iteration_bounds = array<i64: 2>, scalar_prefetch = 0 : i64, scratch_operands = 1 : i64, tpu.core_type = #tpu.core_type<tc>, window_params = [{pipeline_mode = #tpu.pipeline_mode<synchronous>, transform_indices = @transform_0, window_bounds = array<i64: 16, 32>}, {pipeline_mode = #tpu.pipeline_mode<synchronous>, transform_indices = @transform_1, window_bounds = array<i64: 2, 8>}, {pipeline_mode = #tpu.pipeline_mode<synchronous>, transform_indices = @transform_2, window_bounds = array<i64: 4, 32>}, {pipeline_mode = #tpu.pipeline_mode<synchronous>, transform_indices = @transform_3, window_bounds = array<i64: 1, 32>}, {pipeline_mode = #tpu.pipeline_mode<synchronous>, transform_indices = @transform_4, window_bounds = array<i64: 1, 32>}, {pipeline_mode = #tpu.pipeline_mode<synchronous>, transform_indices = @transform_5, window_bounds = array<i64: 32, 128>}, {pipeline_mode = #tpu.pipeline_mode<synchronous>, transform_indices = @transform_6, window_bounds = array<i64: 1, 128>}, {pipeline_mode = #tpu.pipeline_mode<synchronous>, transform_indices = @transform_7, window_bounds = array<i64: 1, 128>}, {pipeline_mode = #tpu.pipeline_mode<synchronous>, transform_indices = @transform_8, window_bounds = array<i64: 1, 1>}, {transform_indices = @transform_9, window_bounds = array<i64: 1, 32, 96>}, {transform_indices = @transform_10, window_bounds = array<i64: 1, 1, 96>}, {transform_indices = @transform_11, window_bounds = array<i64: 1, 32, 32>}, {transform_indices = @transform_12, window_bounds = array<i64: 1, 1, 32>}, {transform_indices = @transform_13, window_bounds = array<i64: 1, 1, 32>}, {transform_indices = @transform_14, window_bounds = array<i64: 1, 1, 32>}, {transform_indices = @transform_15, window_bounds = array<i64: 1, 32, 64>}, {transform_indices = @transform_16, window_bounds = array<i64: 1, 1, 64>}, {transform_indices = @transform_17, window_bounds = array<i64: 1, 64, 32>}, {transform_indices = @transform_18, window_bounds = array<i64: 1, 1, 32>}, {transform_indices = @transform_19, window_bounds = array<i64: 1, 1, 32>}, {transform_indices = @transform_20, window_bounds = array<i64: 1, 1, 32>}, {pipeline_mode = #tpu.pipeline_mode<synchronous>, transform_indices = @transform_21, window_bounds = array<i64: 2, 1>}]} {
    %c0_i32 = arith.constant 0 : i32
    %0 = arith.cmpi eq, %arg0, %c0_i32 : i32
    %1 = arith.extui %0 : i1 to i32
    %c0_i32_0 = arith.constant 0 : i32
    %2 = arith.cmpi ne, %1, %c0_i32_0 : i32
    scf.if %2 {
      %c0_117 = arith.constant 0 : index
      %c0_118 = arith.constant 0 : index
      %323 = vector.load %arg1[%c0_117, %c0_118] : memref<16x32xf32, #tpu.memory_space<vmem>>, vector<16x32xf32>
      %c0_119 = arith.constant 0 : index
      %c0_120 = arith.constant 0 : index
      %324 = vector.load %arg4[%c0_119, %c0_120] : memref<1x32xf32, #tpu.memory_space<vmem>>, vector<1x32xf32>
      %c0_121 = arith.constant 0 : index
      %c0_122 = arith.constant 0 : index
      %325 = vector.load %arg5[%c0_121, %c0_122] : memref<1x32xf32, #tpu.memory_space<vmem>>, vector<1x32xf32>
      %cst_123 = arith.constant dense<0.000000e+00> : vector<16xf32>
      %326 = vector.multi_reduction <add>, %323, %cst_123 [1] : vector<16x32xf32> to vector<16xf32>
      %327 = vector.shape_cast %326 : vector<16xf32> to vector<16x1xf32>
      %cst_124 = arith.constant 3.200000e+01 : f32
      %328 = vector.broadcast %cst_124 : f32 to vector<16x1xf32>
      %329 = arith.divf %327, %328 : vector<16x1xf32>
      %330 = vector.broadcast %329 : vector<16x1xf32> to vector<16x32xf32>
      %331 = arith.subf %323, %330 : vector<16x32xf32>
      %332 = arith.mulf %331, %331 : vector<16x32xf32>
      %cst_125 = arith.constant dense<0.000000e+00> : vector<16xf32>
      %333 = vector.multi_reduction <add>, %332, %cst_125 [1] : vector<16x32xf32> to vector<16xf32>
      %334 = vector.shape_cast %333 : vector<16xf32> to vector<16x1xf32>
      %cst_126 = arith.constant 3.200000e+01 : f32
      %335 = vector.broadcast %cst_126 : f32 to vector<16x1xf32>
      %336 = arith.divf %334, %335 : vector<16x1xf32>
      %337 = vector.broadcast %329 : vector<16x1xf32> to vector<16x32xf32>
      %338 = arith.subf %323, %337 : vector<16x32xf32>
      %cst_127 = arith.constant 9.99999974E-6 : f32
      %339 = vector.broadcast %cst_127 : f32 to vector<16x1xf32>
      %340 = arith.addf %336, %339 : vector<16x1xf32>
      %341 = math.rsqrt %340 : vector<16x1xf32>
      %342 = vector.broadcast %341 : vector<16x1xf32> to vector<16x32xf32>
      %343 = arith.mulf %338, %342 : vector<16x32xf32>
      %344 = vector.broadcast %324 : vector<1x32xf32> to vector<16x32xf32>
      %345 = arith.mulf %343, %344 : vector<16x32xf32>
      %346 = vector.broadcast %325 : vector<1x32xf32> to vector<16x32xf32>
      %347 = arith.addf %345, %346 : vector<16x32xf32>
      %c0_128 = arith.constant 0 : index
      %c0_129 = arith.constant 0 : index
      %348 = vector.load %arg23[%c0_128, %c0_129] : memref<16x32xf32, #tpu.memory_space<vmem>>, vector<16x32xf32>
      tpu.vector_store %arg23[%c0_128, %c0_129], %347 {strides = array<i32>} : memref<16x32xf32, #tpu.memory_space<vmem>>, vector<16x32xf32>,
    } else {
    }
    %c0 = arith.constant 0 : index
    %c0_1 = arith.constant 0 : index
    %3 = vector.load %arg23[%c0, %c0_1] : memref<16x32xf32, #tpu.memory_space<vmem>>, vector<16x32xf32>
    %4 = arith.truncf %3 : vector<16x32xf32> to vector<16x32xbf16>
    %c0_2 = arith.constant 0 : index
    %c0_3 = arith.constant 0 : index
    %c0_4 = arith.constant 0 : index
    %5 = vector.load %arg10[%c0_2, %c0_3, %c0_4] : memref<1x32x96xbf16, #tpu.memory_space<vmem>>, vector<1x32x96xbf16>
    %6 = vector.shape_cast %5 : vector<1x32x96xbf16> to vector<32x96xbf16>
    %cst = arith.constant dense<0.000000e+00> : vector<16x96xf32>
    %7 = tpu.matmul %4, %6, %cst {dimension_numbers = #tpu.dot_dimension_numbers<[1], [0], [0], [1], [0, 0, 1, 1], [], []>} : vector<16x32xbf16>, vector<32x96xbf16>, vector<16x96xf32> -> vector<16x96xf32>
    %c0_5 = arith.constant 0 : index
    %c0_6 = arith.constant 0 : index
    %c0_7 = arith.constant 0 : index
    %8 = vector.load %arg11[%c0_5, %c0_6, %c0_7] : memref<1x1x96xf32, #tpu.memory_space<vmem>>, vector<1x1x96xf32>
    %9 = vector.shape_cast %8 : vector<1x1x96xf32> to vector<1x96xf32>
    %10 = vector.broadcast %9 : vector<1x96xf32> to vector<16x96xf32>
    %11 = arith.addf %7, %10 : vector<16x96xf32>
    %12 = vector.extract_strided_slice %11 {offsets = [0, 0], sizes = [16, 32], strides = [1, 1]} : vector<16x96xf32> to vector<16x32xf32>
    %13 = vector.extract_strided_slice %11 {offsets = [0, 32], sizes = [16, 32], strides = [1, 1]} : vector<16x96xf32> to vector<16x32xf32>
    %14 = vector.extract_strided_slice %11 {offsets = [0, 64], sizes = [16, 32], strides = [1, 1]} : vector<16x96xf32> to vector<16x32xf32>
    %15 = vector.extract_strided_slice %12 {offsets = [0, 0], sizes = [8, 32], strides = [1, 1]} : vector<16x32xf32> to vector<8x32xf32>
    %16 = vector.extract_strided_slice %13 {offsets = [0, 0], sizes = [8, 32], strides = [1, 1]} : vector<16x32xf32> to vector<8x32xf32>
    %17 = arith.truncf %16 : vector<8x32xf32> to vector<8x32xbf16>
    %18 = vector.extract_strided_slice %14 {offsets = [0, 0], sizes = [8, 32], strides = [1, 1]} : vector<16x32xf32> to vector<8x32xf32>
    %c0_8 = arith.constant 0 : index
    %c0_9 = arith.constant 0 : index
    %19 = vector.load %arg2[%c0_8, %c0_9] : memref<2x8xf32, #tpu.memory_space<vmem>>, vector<1x8xf32>
    %cst_10 = arith.constant 0.000000e+00 : f32
    %20 = vector.broadcast %cst_10 : f32 to vector<8x32xf32>
    %c0_11 = arith.constant 0 : index
    %c0_12 = arith.constant 0 : index
    %21 = vector.load %arg3[%c0_11, %c0_12] : memref<4x32xf32, #tpu.memory_space<vmem>>, vector<1x32xf32>
    %22 = vector.broadcast %21 : vector<1x32xf32> to vector<8x32xf32>
    %23 = arith.mulf %15, %22 : vector<8x32xf32>
    %24 = arith.truncf %23 : vector<8x32xf32> to vector<8x32xbf16>
    %cst_13 = arith.constant dense<0.000000e+00> : vector<8x8xf32>
    %25 = tpu.matmul %24, %17, %cst_13 {dimension_numbers = #tpu.dot_dimension_numbers<[1], [1], [0], [0], [0, 0, 1, 0], [], []>} : vector<8x32xbf16>, vector<8x32xbf16>, vector<8x8xf32> -> vector<8x8xf32>
    %cst_14 = arith.constant 0.353553385 : f32
    %26 = vector.broadcast %cst_14 : f32 to vector<8x8xf32>
    %27 = arith.mulf %25, %26 : vector<8x8xf32>
    %28 = vector.broadcast %19 : vector<1x8xf32> to vector<8x8xf32>
    %29 = arith.addf %27, %28 : vector<8x8xf32>
    %cst_15 = arith.constant dense<0xFF800000> : vector<8xf32>
    %30 = vector.multi_reduction <maximumf>, %29, %cst_15 [1] : vector<8x8xf32> to vector<8xf32>
    %31 = vector.shape_cast %30 : vector<8xf32> to vector<8x1xf32>
    %32 = vector.broadcast %31 : vector<8x1xf32> to vector<8x8xf32>
    %33 = arith.subf %29, %32 : vector<8x8xf32>
    %34 = math.exp %33 : vector<8x8xf32>
    %cst_16 = arith.constant dense<0.000000e+00> : vector<8xf32>
    %35 = vector.multi_reduction <add>, %34, %cst_16 [1] : vector<8x8xf32> to vector<8xf32>
    %36 = vector.shape_cast %35 : vector<8xf32> to vector<8x1xf32>
    %37 = tpu.reciprocal %36 {approx = true} : vector<8x1xf32> -> vector<8x1xf32>
    %38 = vector.broadcast %37 : vector<8x1xf32> to vector<8x8xf32>
    %39 = arith.mulf %34, %38 : vector<8x8xf32>
    %40 = vector.broadcast %21 : vector<1x32xf32> to vector<8x32xf32>
    %41 = arith.mulf %18, %40 : vector<8x32xf32>
    %42 = arith.truncf %41 : vector<8x32xf32> to vector<8x32xbf16>
    %43 = arith.truncf %39 : vector<8x8xf32> to vector<8x8xbf16>
    %cst_17 = arith.constant dense<0.000000e+00> : vector<8x32xf32>
    %44 = tpu.matmul %43, %42, %cst_17 {dimension_numbers = #tpu.dot_dimension_numbers<[1], [0], [0], [1], [0, 0, 1, 1], [], []>} : vector<8x8xbf16>, vector<8x32xbf16>, vector<8x32xf32> -> vector<8x32xf32>
    %45 = arith.addf %20, %44 : vector<8x32xf32>
    %c1 = arith.constant 1 : index
    %c0_18 = arith.constant 0 : index
    %46 = vector.load %arg3[%c1, %c0_18] : memref<4x32xf32, #tpu.memory_space<vmem>>, vector<1x32xf32>
    %47 = vector.broadcast %46 : vector<1x32xf32> to vector<8x32xf32>
    %48 = arith.mulf %15, %47 : vector<8x32xf32>
    %49 = arith.truncf %48 : vector<8x32xf32> to vector<8x32xbf16>
    %cst_19 = arith.constant dense<0.000000e+00> : vector<8x8xf32>
    %50 = tpu.matmul %49, %17, %cst_19 {dimension_numbers = #tpu.dot_dimension_numbers<[1], [1], [0], [0], [0, 0, 1, 0], [], []>} : vector<8x32xbf16>, vector<8x32xbf16>, vector<8x8xf32> -> vector<8x8xf32>
    %cst_20 = arith.constant 0.353553385 : f32
    %51 = vector.broadcast %cst_20 : f32 to vector<8x8xf32>
    %52 = arith.mulf %50, %51 : vector<8x8xf32>
    %53 = vector.broadcast %19 : vector<1x8xf32> to vector<8x8xf32>
    %54 = arith.addf %52, %53 : vector<8x8xf32>
    %cst_21 = arith.constant dense<0xFF800000> : vector<8xf32>
    %55 = vector.multi_reduction <maximumf>, %54, %cst_21 [1] : vector<8x8xf32> to vector<8xf32>
    %56 = vector.shape_cast %55 : vector<8xf32> to vector<8x1xf32>
    %57 = vector.broadcast %56 : vector<8x1xf32> to vector<8x8xf32>
    %58 = arith.subf %54, %57 : vector<8x8xf32>
    %59 = math.exp %58 : vector<8x8xf32>
    %cst_22 = arith.constant dense<0.000000e+00> : vector<8xf32>
    %60 = vector.multi_reduction <add>, %59, %cst_22 [1] : vector<8x8xf32> to vector<8xf32>
    %61 = vector.shape_cast %60 : vector<8xf32> to vector<8x1xf32>
    %62 = tpu.reciprocal %61 {approx = true} : vector<8x1xf32> -> vector<8x1xf32>
    %63 = vector.broadcast %62 : vector<8x1xf32> to vector<8x8xf32>
    %64 = arith.mulf %59, %63 : vector<8x8xf32>
    %65 = vector.broadcast %46 : vector<1x32xf32> to vector<8x32xf32>
    %66 = arith.mulf %18, %65 : vector<8x32xf32>
    %67 = arith.truncf %66 : vector<8x32xf32> to vector<8x32xbf16>
    %68 = arith.truncf %64 : vector<8x8xf32> to vector<8x8xbf16>
    %cst_23 = arith.constant dense<0.000000e+00> : vector<8x32xf32>
    %69 = tpu.matmul %68, %67, %cst_23 {dimension_numbers = #tpu.dot_dimension_numbers<[1], [0], [0], [1], [0, 0, 1, 1], [], []>} : vector<8x8xbf16>, vector<8x32xbf16>, vector<8x32xf32> -> vector<8x32xf32>
    %70 = arith.addf %45, %69 : vector<8x32xf32>
    %c2 = arith.constant 2 : index
    %c0_24 = arith.constant 0 : index
    %71 = vector.load %arg3[%c2, %c0_24] : memref<4x32xf32, #tpu.memory_space<vmem>>, vector<1x32xf32>
    %72 = vector.broadcast %71 : vector<1x32xf32> to vector<8x32xf32>
    %73 = arith.mulf %15, %72 : vector<8x32xf32>
    %74 = arith.truncf %73 : vector<8x32xf32> to vector<8x32xbf16>
    %cst_25 = arith.constant dense<0.000000e+00> : vector<8x8xf32>
    %75 = tpu.matmul %74, %17, %cst_25 {dimension_numbers = #tpu.dot_dimension_numbers<[1], [1], [0], [0], [0, 0, 1, 0], [], []>} : vector<8x32xbf16>, vector<8x32xbf16>, vector<8x8xf32> -> vector<8x8xf32>
    %cst_26 = arith.constant 0.353553385 : f32
    %76 = vector.broadcast %cst_26 : f32 to vector<8x8xf32>
    %77 = arith.mulf %75, %76 : vector<8x8xf32>
    %78 = vector.broadcast %19 : vector<1x8xf32> to vector<8x8xf32>
    %79 = arith.addf %77, %78 : vector<8x8xf32>
    %cst_27 = arith.constant dense<0xFF800000> : vector<8xf32>
    %80 = vector.multi_reduction <maximumf>, %79, %cst_27 [1] : vector<8x8xf32> to vector<8xf32>
    %81 = vector.shape_cast %80 : vector<8xf32> to vector<8x1xf32>
    %82 = vector.broadcast %81 : vector<8x1xf32> to vector<8x8xf32>
    %83 = arith.subf %79, %82 : vector<8x8xf32>
    %84 = math.exp %83 : vector<8x8xf32>
    %cst_28 = arith.constant dense<0.000000e+00> : vector<8xf32>
    %85 = vector.multi_reduction <add>, %84, %cst_28 [1] : vector<8x8xf32> to vector<8xf32>
    %86 = vector.shape_cast %85 : vector<8xf32> to vector<8x1xf32>
    %87 = tpu.reciprocal %86 {approx = true} : vector<8x1xf32> -> vector<8x1xf32>
    %88 = vector.broadcast %87 : vector<8x1xf32> to vector<8x8xf32>
    %89 = arith.mulf %84, %88 : vector<8x8xf32>
    %90 = vector.broadcast %71 : vector<1x32xf32> to vector<8x32xf32>
    %91 = arith.mulf %18, %90 : vector<8x32xf32>
    %92 = arith.truncf %91 : vector<8x32xf32> to vector<8x32xbf16>
    %93 = arith.truncf %89 : vector<8x8xf32> to vector<8x8xbf16>
    %cst_29 = arith.constant dense<0.000000e+00> : vector<8x32xf32>
    %94 = tpu.matmul %93, %92, %cst_29 {dimension_numbers = #tpu.dot_dimension_numbers<[1], [0], [0], [1], [0, 0, 1, 1], [], []>} : vector<8x8xbf16>, vector<8x32xbf16>, vector<8x32xf32> -> vector<8x32xf32>
    %95 = arith.addf %70, %94 : vector<8x32xf32>
    %c3 = arith.constant 3 : index
    %c0_30 = arith.constant 0 : index
    %96 = vector.load %arg3[%c3, %c0_30] : memref<4x32xf32, #tpu.memory_space<vmem>>, vector<1x32xf32>
    %97 = vector.broadcast %96 : vector<1x32xf32> to vector<8x32xf32>
    %98 = arith.mulf %15, %97 : vector<8x32xf32>
    %99 = arith.truncf %98 : vector<8x32xf32> to vector<8x32xbf16>
    %cst_31 = arith.constant dense<0.000000e+00> : vector<8x8xf32>
    %100 = tpu.matmul %99, %17, %cst_31 {dimension_numbers = #tpu.dot_dimension_numbers<[1], [1], [0], [0], [0, 0, 1, 0], [], []>} : vector<8x32xbf16>, vector<8x32xbf16>, vector<8x8xf32> -> vector<8x8xf32>
    %cst_32 = arith.constant 0.353553385 : f32
    %101 = vector.broadcast %cst_32 : f32 to vector<8x8xf32>
    %102 = arith.mulf %100, %101 : vector<8x8xf32>
    %103 = vector.broadcast %19 : vector<1x8xf32> to vector<8x8xf32>
    %104 = arith.addf %102, %103 : vector<8x8xf32>
    %cst_33 = arith.constant dense<0xFF800000> : vector<8xf32>
    %105 = vector.multi_reduction <maximumf>, %104, %cst_33 [1] : vector<8x8xf32> to vector<8xf32>
    %106 = vector.shape_cast %105 : vector<8xf32> to vector<8x1xf32>
    %107 = vector.broadcast %106 : vector<8x1xf32> to vector<8x8xf32>
    %108 = arith.subf %104, %107 : vector<8x8xf32>
    %109 = math.exp %108 : vector<8x8xf32>
    %cst_34 = arith.constant dense<0.000000e+00> : vector<8xf32>
    %110 = vector.multi_reduction <add>, %109, %cst_34 [1] : vector<8x8xf32> to vector<8xf32>
    %111 = vector.shape_cast %110 : vector<8xf32> to vector<8x1xf32>
    %112 = tpu.reciprocal %111 {approx = true} : vector<8x1xf32> -> vector<8x1xf32>
    %113 = vector.broadcast %112 : vector<8x1xf32> to vector<8x8xf32>
    %114 = arith.mulf %109, %113 : vector<8x8xf32>
    %115 = vector.broadcast %96 : vector<1x32xf32> to vector<8x32xf32>
    %116 = arith.mulf %18, %115 : vector<8x32xf32>
    %117 = arith.truncf %116 : vector<8x32xf32> to vector<8x32xbf16>
    %118 = arith.truncf %114 : vector<8x8xf32> to vector<8x8xbf16>
    %cst_35 = arith.constant dense<0.000000e+00> : vector<8x32xf32>
    %119 = tpu.matmul %118, %117, %cst_35 {dimension_numbers = #tpu.dot_dimension_numbers<[1], [0], [0], [1], [0, 0, 1, 1], [], []>} : vector<8x8xbf16>, vector<8x32xbf16>, vector<8x32xf32> -> vector<8x32xf32>
    %120 = arith.addf %95, %119 : vector<8x32xf32>
    %121 = vector.extract_strided_slice %12 {offsets = [8, 0], sizes = [8, 32], strides = [1, 1]} : vector<16x32xf32> to vector<8x32xf32>
    %122 = vector.extract_strided_slice %13 {offsets = [8, 0], sizes = [8, 32], strides = [1, 1]} : vector<16x32xf32> to vector<8x32xf32>
    %123 = arith.truncf %122 : vector<8x32xf32> to vector<8x32xbf16>
    %124 = vector.extract_strided_slice %14 {offsets = [8, 0], sizes = [8, 32], strides = [1, 1]} : vector<16x32xf32> to vector<8x32xf32>
    %c1_36 = arith.constant 1 : index
    %c0_37 = arith.constant 0 : index
    %125 = vector.load %arg2[%c1_36, %c0_37] : memref<2x8xf32, #tpu.memory_space<vmem>>, vector<1x8xf32>
    %cst_38 = arith.constant 0.000000e+00 : f32
    %126 = vector.broadcast %cst_38 : f32 to vector<8x32xf32>
    %c0_39 = arith.constant 0 : index
    %c0_40 = arith.constant 0 : index
    %127 = vector.load %arg3[%c0_39, %c0_40] : memref<4x32xf32, #tpu.memory_space<vmem>>, vector<1x32xf32>
    %128 = vector.broadcast %127 : vector<1x32xf32> to vector<8x32xf32>
    %129 = arith.mulf %121, %128 : vector<8x32xf32>
    %130 = arith.truncf %129 : vector<8x32xf32> to vector<8x32xbf16>
    %cst_41 = arith.constant dense<0.000000e+00> : vector<8x8xf32>
    %131 = tpu.matmul %130, %123, %cst_41 {dimension_numbers = #tpu.dot_dimension_numbers<[1], [1], [0], [0], [0, 0, 1, 0], [], []>} : vector<8x32xbf16>, vector<8x32xbf16>, vector<8x8xf32> -> vector<8x8xf32>
    %cst_42 = arith.constant 0.353553385 : f32
    %132 = vector.broadcast %cst_42 : f32 to vector<8x8xf32>
    %133 = arith.mulf %131, %132 : vector<8x8xf32>
    %134 = vector.broadcast %125 : vector<1x8xf32> to vector<8x8xf32>
    %135 = arith.addf %133, %134 : vector<8x8xf32>
    %cst_43 = arith.constant dense<0xFF800000> : vector<8xf32>
    %136 = vector.multi_reduction <maximumf>, %135, %cst_43 [1] : vector<8x8xf32> to vector<8xf32>
    %137 = vector.shape_cast %136 : vector<8xf32> to vector<8x1xf32>
    %138 = vector.broadcast %137 : vector<8x1xf32> to vector<8x8xf32>
    %139 = arith.subf %135, %138 : vector<8x8xf32>
    %140 = math.exp %139 : vector<8x8xf32>
    %cst_44 = arith.constant dense<0.000000e+00> : vector<8xf32>
    %141 = vector.multi_reduction <add>, %140, %cst_44 [1] : vector<8x8xf32> to vector<8xf32>
    %142 = vector.shape_cast %141 : vector<8xf32> to vector<8x1xf32>
    %143 = tpu.reciprocal %142 {approx = true} : vector<8x1xf32> -> vector<8x1xf32>
    %144 = vector.broadcast %143 : vector<8x1xf32> to vector<8x8xf32>
    %145 = arith.mulf %140, %144 : vector<8x8xf32>
    %146 = vector.broadcast %127 : vector<1x32xf32> to vector<8x32xf32>
    %147 = arith.mulf %124, %146 : vector<8x32xf32>
    %148 = arith.truncf %147 : vector<8x32xf32> to vector<8x32xbf16>
    %149 = arith.truncf %145 : vector<8x8xf32> to vector<8x8xbf16>
    %cst_45 = arith.constant dense<0.000000e+00> : vector<8x32xf32>
    %150 = tpu.matmul %149, %148, %cst_45 {dimension_numbers = #tpu.dot_dimension_numbers<[1], [0], [0], [1], [0, 0, 1, 1], [], []>} : vector<8x8xbf16>, vector<8x32xbf16>, vector<8x32xf32> -> vector<8x32xf32>
    %151 = arith.addf %126, %150 : vector<8x32xf32>
    %c1_46 = arith.constant 1 : index
    %c0_47 = arith.constant 0 : index
    %152 = vector.load %arg3[%c1_46, %c0_47] : memref<4x32xf32, #tpu.memory_space<vmem>>, vector<1x32xf32>
    %153 = vector.broadcast %152 : vector<1x32xf32> to vector<8x32xf32>
    %154 = arith.mulf %121, %153 : vector<8x32xf32>
    %155 = arith.truncf %154 : vector<8x32xf32> to vector<8x32xbf16>
    %cst_48 = arith.constant dense<0.000000e+00> : vector<8x8xf32>
    %156 = tpu.matmul %155, %123, %cst_48 {dimension_numbers = #tpu.dot_dimension_numbers<[1], [1], [0], [0], [0, 0, 1, 0], [], []>} : vector<8x32xbf16>, vector<8x32xbf16>, vector<8x8xf32> -> vector<8x8xf32>
    %cst_49 = arith.constant 0.353553385 : f32
    %157 = vector.broadcast %cst_49 : f32 to vector<8x8xf32>
    %158 = arith.mulf %156, %157 : vector<8x8xf32>
    %159 = vector.broadcast %125 : vector<1x8xf32> to vector<8x8xf32>
    %160 = arith.addf %158, %159 : vector<8x8xf32>
    %cst_50 = arith.constant dense<0xFF800000> : vector<8xf32>
    %161 = vector.multi_reduction <maximumf>, %160, %cst_50 [1] : vector<8x8xf32> to vector<8xf32>
    %162 = vector.shape_cast %161 : vector<8xf32> to vector<8x1xf32>
    %163 = vector.broadcast %162 : vector<8x1xf32> to vector<8x8xf32>
    %164 = arith.subf %160, %163 : vector<8x8xf32>
    %165 = math.exp %164 : vector<8x8xf32>
    %cst_51 = arith.constant dense<0.000000e+00> : vector<8xf32>
    %166 = vector.multi_reduction <add>, %165, %cst_51 [1] : vector<8x8xf32> to vector<8xf32>
    %167 = vector.shape_cast %166 : vector<8xf32> to vector<8x1xf32>
    %168 = tpu.reciprocal %167 {approx = true} : vector<8x1xf32> -> vector<8x1xf32>
    %169 = vector.broadcast %168 : vector<8x1xf32> to vector<8x8xf32>
    %170 = arith.mulf %165, %169 : vector<8x8xf32>
    %171 = vector.broadcast %152 : vector<1x32xf32> to vector<8x32xf32>
    %172 = arith.mulf %124, %171 : vector<8x32xf32>
    %173 = arith.truncf %172 : vector<8x32xf32> to vector<8x32xbf16>
    %174 = arith.truncf %170 : vector<8x8xf32> to vector<8x8xbf16>
    %cst_52 = arith.constant dense<0.000000e+00> : vector<8x32xf32>
    %175 = tpu.matmul %174, %173, %cst_52 {dimension_numbers = #tpu.dot_dimension_numbers<[1], [0], [0], [1], [0, 0, 1, 1], [], []>} : vector<8x8xbf16>, vector<8x32xbf16>, vector<8x32xf32> -> vector<8x32xf32>
    %176 = arith.addf %151, %175 : vector<8x32xf32>
    %c2_53 = arith.constant 2 : index
    %c0_54 = arith.constant 0 : index
    %177 = vector.load %arg3[%c2_53, %c0_54] : memref<4x32xf32, #tpu.memory_space<vmem>>, vector<1x32xf32>
    %178 = vector.broadcast %177 : vector<1x32xf32> to vector<8x32xf32>
    %179 = arith.mulf %121, %178 : vector<8x32xf32>
    %180 = arith.truncf %179 : vector<8x32xf32> to vector<8x32xbf16>
    %cst_55 = arith.constant dense<0.000000e+00> : vector<8x8xf32>
    %181 = tpu.matmul %180, %123, %cst_55 {dimension_numbers = #tpu.dot_dimension_numbers<[1], [1], [0], [0], [0, 0, 1, 0], [], []>} : vector<8x32xbf16>, vector<8x32xbf16>, vector<8x8xf32> -> vector<8x8xf32>
    %cst_56 = arith.constant 0.353553385 : f32
    %182 = vector.broadcast %cst_56 : f32 to vector<8x8xf32>
    %183 = arith.mulf %181, %182 : vector<8x8xf32>
    %184 = vector.broadcast %125 : vector<1x8xf32> to vector<8x8xf32>
    %185 = arith.addf %183, %184 : vector<8x8xf32>
    %cst_57 = arith.constant dense<0xFF800000> : vector<8xf32>
    %186 = vector.multi_reduction <maximumf>, %185, %cst_57 [1] : vector<8x8xf32> to vector<8xf32>
    %187 = vector.shape_cast %186 : vector<8xf32> to vector<8x1xf32>
    %188 = vector.broadcast %187 : vector<8x1xf32> to vector<8x8xf32>
    %189 = arith.subf %185, %188 : vector<8x8xf32>
    %190 = math.exp %189 : vector<8x8xf32>
    %cst_58 = arith.constant dense<0.000000e+00> : vector<8xf32>
    %191 = vector.multi_reduction <add>, %190, %cst_58 [1] : vector<8x8xf32> to vector<8xf32>
    %192 = vector.shape_cast %191 : vector<8xf32> to vector<8x1xf32>
    %193 = tpu.reciprocal %192 {approx = true} : vector<8x1xf32> -> vector<8x1xf32>
    %194 = vector.broadcast %193 : vector<8x1xf32> to vector<8x8xf32>
    %195 = arith.mulf %190, %194 : vector<8x8xf32>
    %196 = vector.broadcast %177 : vector<1x32xf32> to vector<8x32xf32>
    %197 = arith.mulf %124, %196 : vector<8x32xf32>
    %198 = arith.truncf %197 : vector<8x32xf32> to vector<8x32xbf16>
    %199 = arith.truncf %195 : vector<8x8xf32> to vector<8x8xbf16>
    %cst_59 = arith.constant dense<0.000000e+00> : vector<8x32xf32>
    %200 = tpu.matmul %199, %198, %cst_59 {dimension_numbers = #tpu.dot_dimension_numbers<[1], [0], [0], [1], [0, 0, 1, 1], [], []>} : vector<8x8xbf16>, vector<8x32xbf16>, vector<8x32xf32> -> vector<8x32xf32>
    %201 = arith.addf %176, %200 : vector<8x32xf32>
    %c3_60 = arith.constant 3 : index
    %c0_61 = arith.constant 0 : index
    %202 = vector.load %arg3[%c3_60, %c0_61] : memref<4x32xf32, #tpu.memory_space<vmem>>, vector<1x32xf32>
    %203 = vector.broadcast %202 : vector<1x32xf32> to vector<8x32xf32>
    %204 = arith.mulf %121, %203 : vector<8x32xf32>
    %205 = arith.truncf %204 : vector<8x32xf32> to vector<8x32xbf16>
    %cst_62 = arith.constant dense<0.000000e+00> : vector<8x8xf32>
    %206 = tpu.matmul %205, %123, %cst_62 {dimension_numbers = #tpu.dot_dimension_numbers<[1], [1], [0], [0], [0, 0, 1, 0], [], []>} : vector<8x32xbf16>, vector<8x32xbf16>, vector<8x8xf32> -> vector<8x8xf32>
    %cst_63 = arith.constant 0.353553385 : f32
    %207 = vector.broadcast %cst_63 : f32 to vector<8x8xf32>
    %208 = arith.mulf %206, %207 : vector<8x8xf32>
    %209 = vector.broadcast %125 : vector<1x8xf32> to vector<8x8xf32>
    %210 = arith.addf %208, %209 : vector<8x8xf32>
    %cst_64 = arith.constant dense<0xFF800000> : vector<8xf32>
    %211 = vector.multi_reduction <maximumf>, %210, %cst_64 [1] : vector<8x8xf32> to vector<8xf32>
    %212 = vector.shape_cast %211 : vector<8xf32> to vector<8x1xf32>
    %213 = vector.broadcast %212 : vector<8x1xf32> to vector<8x8xf32>
    %214 = arith.subf %210, %213 : vector<8x8xf32>
    %215 = math.exp %214 : vector<8x8xf32>
    %cst_65 = arith.constant dense<0.000000e+00> : vector<8xf32>
    %216 = vector.multi_reduction <add>, %215, %cst_65 [1] : vector<8x8xf32> to vector<8xf32>
    %217 = vector.shape_cast %216 : vector<8xf32> to vector<8x1xf32>
    %218 = tpu.reciprocal %217 {approx = true} : vector<8x1xf32> -> vector<8x1xf32>
    %219 = vector.broadcast %218 : vector<8x1xf32> to vector<8x8xf32>
    %220 = arith.mulf %215, %219 : vector<8x8xf32>
    %221 = vector.broadcast %202 : vector<1x32xf32> to vector<8x32xf32>
    %222 = arith.mulf %124, %221 : vector<8x32xf32>
    %223 = arith.truncf %222 : vector<8x32xf32> to vector<8x32xbf16>
    %224 = arith.truncf %220 : vector<8x8xf32> to vector<8x8xbf16>
    %cst_66 = arith.constant dense<0.000000e+00> : vector<8x32xf32>
    %225 = tpu.matmul %224, %223, %cst_66 {dimension_numbers = #tpu.dot_dimension_numbers<[1], [0], [0], [1], [0, 0, 1, 1], [], []>} : vector<8x8xbf16>, vector<8x32xbf16>, vector<8x32xf32> -> vector<8x32xf32>
    %226 = arith.addf %201, %225 : vector<8x32xf32>
    %227 = tpu.concatenate %120, %226 in 0 : vector<8x32xf32>, vector<8x32xf32> -> vector<16x32xf32>
    %228 = arith.truncf %227 : vector<16x32xf32> to vector<16x32xbf16>
    %c0_67 = arith.constant 0 : index
    %c0_68 = arith.constant 0 : index
    %c0_69 = arith.constant 0 : index
    %229 = vector.load %arg12[%c0_67, %c0_68, %c0_69] : memref<1x32x32xbf16, #tpu.memory_space<vmem>>, vector<1x32x32xbf16>
    %230 = vector.shape_cast %229 : vector<1x32x32xbf16> to vector<32x32xbf16>
    %cst_70 = arith.constant dense<0.000000e+00> : vector<16x32xf32>
    %231 = tpu.matmul %228, %230, %cst_70 {dimension_numbers = #tpu.dot_dimension_numbers<[1], [0], [0], [1], [0, 0, 1, 1], [], []>} : vector<16x32xbf16>, vector<32x32xbf16>, vector<16x32xf32> -> vector<16x32xf32>
    %c0_71 = arith.constant 0 : index
    %c0_72 = arith.constant 0 : index
    %c0_73 = arith.constant 0 : index
    %232 = vector.load %arg13[%c0_71, %c0_72, %c0_73] : memref<1x1x32xf32, #tpu.memory_space<vmem>>, vector<1x1x32xf32>
    %233 = vector.shape_cast %232 : vector<1x1x32xf32> to vector<1x32xf32>
    %234 = vector.broadcast %233 : vector<1x32xf32> to vector<16x32xf32>
    %235 = arith.addf %231, %234 : vector<16x32xf32>
    %236 = arith.addf %235, %3 : vector<16x32xf32>
    %c0_74 = arith.constant 0 : index
    %c0_75 = arith.constant 0 : index
    %c0_76 = arith.constant 0 : index
    %237 = vector.load %arg14[%c0_74, %c0_75, %c0_76] : memref<1x1x32xf32, #tpu.memory_space<vmem>>, vector<1x1x32xf32>
    %238 = vector.shape_cast %237 : vector<1x1x32xf32> to vector<1x32xf32>
    %c0_77 = arith.constant 0 : index
    %c0_78 = arith.constant 0 : index
    %c0_79 = arith.constant 0 : index
    %239 = vector.load %arg15[%c0_77, %c0_78, %c0_79] : memref<1x1x32xf32, #tpu.memory_space<vmem>>, vector<1x1x32xf32>
    %240 = vector.shape_cast %239 : vector<1x1x32xf32> to vector<1x32xf32>
    %cst_80 = arith.constant dense<0.000000e+00> : vector<16xf32>
    %241 = vector.multi_reduction <add>, %236, %cst_80 [1] : vector<16x32xf32> to vector<16xf32>
    %242 = vector.shape_cast %241 : vector<16xf32> to vector<16x1xf32>
    %cst_81 = arith.constant 3.200000e+01 : f32
    %243 = vector.broadcast %cst_81 : f32 to vector<16x1xf32>
    %244 = arith.divf %242, %243 : vector<16x1xf32>
    %245 = vector.broadcast %244 : vector<16x1xf32> to vector<16x32xf32>
    %246 = arith.subf %236, %245 : vector<16x32xf32>
    %247 = arith.mulf %246, %246 : vector<16x32xf32>
    %cst_82 = arith.constant dense<0.000000e+00> : vector<16xf32>
    %248 = vector.multi_reduction <add>, %247, %cst_82 [1] : vector<16x32xf32> to vector<16xf32>
    %249 = vector.shape_cast %248 : vector<16xf32> to vector<16x1xf32>
    %cst_83 = arith.constant 3.200000e+01 : f32
    %250 = vector.broadcast %cst_83 : f32 to vector<16x1xf32>
    %251 = arith.divf %249, %250 : vector<16x1xf32>
    %252 = vector.broadcast %244 : vector<16x1xf32> to vector<16x32xf32>
    %253 = arith.subf %236, %252 : vector<16x32xf32>
    %cst_84 = arith.constant 9.99999974E-6 : f32
    %254 = vector.broadcast %cst_84 : f32 to vector<16x1xf32>
    %255 = arith.addf %251, %254 : vector<16x1xf32>
    %256 = math.rsqrt %255 : vector<16x1xf32>
    %257 = vector.broadcast %256 : vector<16x1xf32> to vector<16x32xf32>
    %258 = arith.mulf %253, %257 : vector<16x32xf32>
    %259 = vector.broadcast %238 : vector<1x32xf32> to vector<16x32xf32>
    %260 = arith.mulf %258, %259 : vector<16x32xf32>
    %261 = vector.broadcast %240 : vector<1x32xf32> to vector<16x32xf32>
    %262 = arith.addf %260, %261 : vector<16x32xf32>
    %263 = arith.truncf %262 : vector<16x32xf32> to vector<16x32xbf16>
    %c0_85 = arith.constant 0 : index
    %c0_86 = arith.constant 0 : index
    %c0_87 = arith.constant 0 : index
    %264 = vector.load %arg16[%c0_85, %c0_86, %c0_87] : memref<1x32x64xbf16, #tpu.memory_space<vmem>>, vector<1x32x64xbf16>
    %265 = vector.shape_cast %264 : vector<1x32x64xbf16> to vector<32x64xbf16>
    %cst_88 = arith.constant dense<0.000000e+00> : vector<16x64xf32>
    %266 = tpu.matmul %263, %265, %cst_88 {dimension_numbers = #tpu.dot_dimension_numbers<[1], [0], [0], [1], [0, 0, 1, 1], [], []>} : vector<16x32xbf16>, vector<32x64xbf16>, vector<16x64xf32> -> vector<16x64xf32>
    %c0_89 = arith.constant 0 : index
    %c0_90 = arith.constant 0 : index
    %c0_91 = arith.constant 0 : index
    %267 = vector.load %arg17[%c0_89, %c0_90, %c0_91] : memref<1x1x64xf32, #tpu.memory_space<vmem>>, vector<1x1x64xf32>
    %268 = vector.shape_cast %267 : vector<1x1x64xf32> to vector<1x64xf32>
    %269 = vector.broadcast %268 : vector<1x64xf32> to vector<16x64xf32>
    %270 = arith.addf %266, %269 : vector<16x64xf32>
    %271 = arith.mulf %270, %270 : vector<16x64xf32>
    %272 = arith.mulf %270, %271 : vector<16x64xf32>
    %cst_92 = arith.constant 4.471500e-02 : f32
    %273 = vector.broadcast %cst_92 : f32 to vector<16x64xf32>
    %274 = arith.mulf %273, %272 : vector<16x64xf32>
    %275 = arith.addf %270, %274 : vector<16x64xf32>
    %cst_93 = arith.constant 0.797884583 : f32
    %276 = vector.broadcast %cst_93 : f32 to vector<16x64xf32>
    %277 = arith.mulf %276, %275 : vector<16x64xf32>
    %278 = math.tanh %277 : vector<16x64xf32>
    %cst_94 = arith.constant 1.000000e+00 : f32
    %279 = vector.broadcast %cst_94 : f32 to vector<16x64xf32>
    %280 = arith.addf %279, %278 : vector<16x64xf32>
    %cst_95 = arith.constant 5.000000e-01 : f32
    %281 = vector.broadcast %cst_95 : f32 to vector<16x64xf32>
    %282 = arith.mulf %281, %280 : vector<16x64xf32>
    %283 = arith.mulf %270, %282 : vector<16x64xf32>
    %284 = arith.truncf %283 : vector<16x64xf32> to vector<16x64xbf16>
    %c0_96 = arith.constant 0 : index
    %c0_97 = arith.constant 0 : index
    %c0_98 = arith.constant 0 : index
    %285 = vector.load %arg18[%c0_96, %c0_97, %c0_98] : memref<1x64x32xbf16, #tpu.memory_space<vmem>>, vector<1x64x32xbf16>
    %286 = vector.shape_cast %285 : vector<1x64x32xbf16> to vector<64x32xbf16>
    %cst_99 = arith.constant dense<0.000000e+00> : vector<16x32xf32>
    %287 = tpu.matmul %284, %286, %cst_99 {dimension_numbers = #tpu.dot_dimension_numbers<[1], [0], [0], [1], [0, 0, 1, 1], [], []>} : vector<16x64xbf16>, vector<64x32xbf16>, vector<16x32xf32> -> vector<16x32xf32>
    %c0_100 = arith.constant 0 : index
    %c0_101 = arith.constant 0 : index
    %c0_102 = arith.constant 0 : index
    %288 = vector.load %arg19[%c0_100, %c0_101, %c0_102] : memref<1x1x32xf32, #tpu.memory_space<vmem>>, vector<1x1x32xf32>
    %289 = vector.shape_cast %288 : vector<1x1x32xf32> to vector<1x32xf32>
    %290 = vector.broadcast %289 : vector<1x32xf32> to vector<16x32xf32>
    %291 = arith.addf %287, %290 : vector<16x32xf32>
    %292 = arith.addf %291, %262 : vector<16x32xf32>
    %c0_103 = arith.constant 0 : index
    %c0_104 = arith.constant 0 : index
    %c0_105 = arith.constant 0 : index
    %293 = vector.load %arg20[%c0_103, %c0_104, %c0_105] : memref<1x1x32xf32, #tpu.memory_space<vmem>>, vector<1x1x32xf32>
    %294 = vector.shape_cast %293 : vector<1x1x32xf32> to vector<1x32xf32>
    %c0_106 = arith.constant 0 : index
    %c0_107 = arith.constant 0 : index
    %c0_108 = arith.constant 0 : index
    %295 = vector.load %arg21[%c0_106, %c0_107, %c0_108] : memref<1x1x32xf32, #tpu.memory_space<vmem>>, vector<1x1x32xf32>
    %296 = vector.shape_cast %295 : vector<1x1x32xf32> to vector<1x32xf32>
    %cst_109 = arith.constant dense<0.000000e+00> : vector<16xf32>
    %297 = vector.multi_reduction <add>, %292, %cst_109 [1] : vector<16x32xf32> to vector<16xf32>
    %298 = vector.shape_cast %297 : vector<16xf32> to vector<16x1xf32>
    %cst_110 = arith.constant 3.200000e+01 : f32
    %299 = vector.broadcast %cst_110 : f32 to vector<16x1xf32>
    %300 = arith.divf %298, %299 : vector<16x1xf32>
    %301 = vector.broadcast %300 : vector<16x1xf32> to vector<16x32xf32>
    %302 = arith.subf %292, %301 : vector<16x32xf32>
    %303 = arith.mulf %302, %302 : vector<16x32xf32>
    %cst_111 = arith.constant dense<0.000000e+00> : vector<16xf32>
    %304 = vector.multi_reduction <add>, %303, %cst_111 [1] : vector<16x32xf32> to vector<16xf32>
    %305 = vector.shape_cast %304 : vector<16xf32> to vector<16x1xf32>
    %cst_112 = arith.constant 3.200000e+01 : f32
    %306 = vector.broadcast %cst_112 : f32 to vector<16x1xf32>
    %307 = arith.divf %305, %306 : vector<16x1xf32>
    %308 = vector.broadcast %300 : vector<16x1xf32> to vector<16x32xf32>
    %309 = arith.subf %292, %308 : vector<16x32xf32>
    %cst_113 = arith.constant 9.99999974E-6 : f32
    %310 = vector.broadcast %cst_113 : f32 to vector<16x1xf32>
    %311 = arith.addf %307, %310 : vector<16x1xf32>
    %312 = math.rsqrt %311 : vector<16x1xf32>
    %313 = vector.broadcast %312 : vector<16x1xf32> to vector<16x32xf32>
    %314 = arith.mulf %309, %313 : vector<16x32xf32>
    %315 = vector.broadcast %294 : vector<1x32xf32> to vector<16x32xf32>
    %316 = arith.mulf %314, %315 : vector<16x32xf32>
    %317 = vector.broadcast %296 : vector<1x32xf32> to vector<16x32xf32>
    %318 = arith.addf %316, %317 : vector<16x32xf32>
    %c0_114 = arith.constant 0 : index
    %c0_115 = arith.constant 0 : index
    %319 = vector.load %arg23[%c0_114, %c0_115] : memref<16x32xf32, #tpu.memory_space<vmem>>, vector<16x32xf32>
    tpu.vector_store %arg23[%c0_114, %c0_115], %318 {strides = array<i32>} : memref<16x32xf32, #tpu.memory_space<vmem>>, vector<16x32xf32>,
    %c1_i32 = arith.constant 1 : i32
    %320 = arith.cmpi eq, %arg0, %c1_i32 : i32
    %321 = arith.extui %320 : i1 to i32
    %c0_i32_116 = arith.constant 0 : i32
    %322 = arith.cmpi ne, %321, %c0_i32_116 : i32
    scf.if %322 {
      %323 = vector.extract_strided_slice %318 {offsets = [0, 0], sizes = [1, 32], strides = [1, 1]} : vector<16x32xf32> to vector<1x32xf32>
      %324 = vector.extract_strided_slice %318 {offsets = [8, 0], sizes = [1, 32], strides = [1, 1]} : vector<16x32xf32> to vector<1x32xf32>
      %325 = tpu.concatenate %323, %324 in 0 : vector<1x32xf32>, vector<1x32xf32> -> vector<2x32xf32>
      %c0_117 = arith.constant 0 : index
      %c0_118 = arith.constant 0 : index
      %326 = vector.load %arg6[%c0_117, %c0_118] : memref<32x128xf32, #tpu.memory_space<vmem>>, vector<32x128xf32>
      %cst_119 = arith.constant dense<0.000000e+00> : vector<2x128xf32>
      %327 = tpu.matmul %325, %326, %cst_119 {dimension_numbers = #tpu.dot_dimension_numbers<[1], [0], [0], [1], [0, 0, 1, 1], [], []>} : vector<2x32xf32>, vector<32x128xf32>, vector<2x128xf32> -> vector<2x128xf32>
      %c0_120 = arith.constant 0 : index
      %c0_121 = arith.constant 0 : index
      %328 = vector.load %arg7[%c0_120, %c0_121] : memref<1x128xf32, #tpu.memory_space<vmem>>, vector<1x128xf32>
      %329 = vector.broadcast %328 : vector<1x128xf32> to vector<2x128xf32>
      %330 = arith.addf %327, %329 : vector<2x128xf32>
      %cst_122 = arith.constant 0.000000e+00 : f32
      %331 = vector.broadcast %cst_122 : f32 to vector<2x128xf32>
      %332 = arith.maximumf %330, %331 : vector<2x128xf32>
      %c0_123 = arith.constant 0 : index
      %c0_124 = arith.constant 0 : index
      %333 = vector.load %arg8[%c0_123, %c0_124] : memref<1x128xf32, #tpu.memory_space<vmem>>, vector<1x128xf32>
      %334 = vector.broadcast %333 : vector<1x128xf32> to vector<2x128xf32>
      %335 = arith.mulf %332, %334 : vector<2x128xf32>
      %cst_125 = arith.constant dense<0.000000e+00> : vector<2xf32>
      %336 = vector.multi_reduction <add>, %335, %cst_125 [1] : vector<2x128xf32> to vector<2xf32>
      %337 = vector.shape_cast %336 : vector<2xf32> to vector<2x1xf32>
      %c0_126 = arith.constant 0 : index
      %c0_127 = arith.constant 0 : index
      %338 = vector.load %arg9[%c0_126, %c0_127] : memref<1x1xf32, #tpu.memory_space<vmem>>, vector<1x1xf32>
      %339 = vector.broadcast %338 : vector<1x1xf32> to vector<2x1xf32>
      %340 = arith.addf %337, %339 : vector<2x1xf32>
      %c0_128 = arith.constant 0 : index
      %c0_129 = arith.constant 0 : index
      %341 = vector.load %arg22[%c0_128, %c0_129] : memref<2x1xf32, #tpu.memory_space<vmem>>, vector<2x1xf32>
      tpu.vector_store %arg22[%c0_128, %c0_129], %340 {strides = array<i32>} : memref<2x1xf32, #tpu.memory_space<vmem>>, vector<2x1xf32>,
    } else {
    }
    return
  }
  func.func @transform_0(%arg0: i32) -> (i32, i32) {
    %c0_i32 = arith.constant 0 : i32
    %c0_i32_0 = arith.constant 0 : i32
    %c0_i32_1 = arith.constant 0 : i32
    return %c0_i32, %c0_i32_0 : i32, i32
  }
  func.func @transform_1(%arg0: i32) -> (i32, i32) {
    %c0_i32 = arith.constant 0 : i32
    %c0_i32_0 = arith.constant 0 : i32
    %c0_i32_1 = arith.constant 0 : i32
    return %c0_i32, %c0_i32_0 : i32, i32
  }
  func.func @transform_2(%arg0: i32) -> (i32, i32) {
    %c0_i32 = arith.constant 0 : i32
    %c0_i32_0 = arith.constant 0 : i32
    %c0_i32_1 = arith.constant 0 : i32
    return %c0_i32, %c0_i32_0 : i32, i32
  }
  func.func @transform_3(%arg0: i32) -> (i32, i32) {
    %c0_i32 = arith.constant 0 : i32
    %c0_i32_0 = arith.constant 0 : i32
    %c0_i32_1 = arith.constant 0 : i32
    return %c0_i32, %c0_i32_0 : i32, i32
  }
  func.func @transform_4(%arg0: i32) -> (i32, i32) {
    %c0_i32 = arith.constant 0 : i32
    %c0_i32_0 = arith.constant 0 : i32
    %c0_i32_1 = arith.constant 0 : i32
    return %c0_i32, %c0_i32_0 : i32, i32
  }
  func.func @transform_5(%arg0: i32) -> (i32, i32) {
    %c0_i32 = arith.constant 0 : i32
    %c0_i32_0 = arith.constant 0 : i32
    %c0_i32_1 = arith.constant 0 : i32
    return %c0_i32, %c0_i32_0 : i32, i32
  }
  func.func @transform_6(%arg0: i32) -> (i32, i32) {
    %c0_i32 = arith.constant 0 : i32
    %c0_i32_0 = arith.constant 0 : i32
    %c0_i32_1 = arith.constant 0 : i32
    return %c0_i32, %c0_i32_0 : i32, i32
  }
  func.func @transform_7(%arg0: i32) -> (i32, i32) {
    %c0_i32 = arith.constant 0 : i32
    %c0_i32_0 = arith.constant 0 : i32
    %c0_i32_1 = arith.constant 0 : i32
    return %c0_i32, %c0_i32_0 : i32, i32
  }
  func.func @transform_8(%arg0: i32) -> (i32, i32) {
    %c0_i32 = arith.constant 0 : i32
    %c0_i32_0 = arith.constant 0 : i32
    %c0_i32_1 = arith.constant 0 : i32
    return %c0_i32, %c0_i32_0 : i32, i32
  }
  func.func @transform_9(%arg0: i32) -> (i32, i32, i32) {
    %c0_i32 = arith.constant 0 : i32
    %c0_i32_0 = arith.constant 0 : i32
    %c0_i32_1 = arith.constant 0 : i32
    return %arg0, %c0_i32, %c0_i32_0 : i32, i32, i32
  }
  func.func @transform_10(%arg0: i32) -> (i32, i32, i32) {
    %c0_i32 = arith.constant 0 : i32
    %c0_i32_0 = arith.constant 0 : i32
    %c0_i32_1 = arith.constant 0 : i32
    return %arg0, %c0_i32, %c0_i32_0 : i32, i32, i32
  }
  func.func @transform_11(%arg0: i32) -> (i32, i32, i32) {
    %c0_i32 = arith.constant 0 : i32
    %c0_i32_0 = arith.constant 0 : i32
    %c0_i32_1 = arith.constant 0 : i32
    return %arg0, %c0_i32, %c0_i32_0 : i32, i32, i32
  }
  func.func @transform_12(%arg0: i32) -> (i32, i32, i32) {
    %c0_i32 = arith.constant 0 : i32
    %c0_i32_0 = arith.constant 0 : i32
    %c0_i32_1 = arith.constant 0 : i32
    return %arg0, %c0_i32, %c0_i32_0 : i32, i32, i32
  }
  func.func @transform_13(%arg0: i32) -> (i32, i32, i32) {
    %c0_i32 = arith.constant 0 : i32
    %c0_i32_0 = arith.constant 0 : i32
    %c0_i32_1 = arith.constant 0 : i32
    return %arg0, %c0_i32, %c0_i32_0 : i32, i32, i32
  }
  func.func @transform_14(%arg0: i32) -> (i32, i32, i32) {
    %c0_i32 = arith.constant 0 : i32
    %c0_i32_0 = arith.constant 0 : i32
    %c0_i32_1 = arith.constant 0 : i32
    return %arg0, %c0_i32, %c0_i32_0 : i32, i32, i32
  }
  func.func @transform_15(%arg0: i32) -> (i32, i32, i32) {
    %c0_i32 = arith.constant 0 : i32
    %c0_i32_0 = arith.constant 0 : i32
    %c0_i32_1 = arith.constant 0 : i32
    return %arg0, %c0_i32, %c0_i32_0 : i32, i32, i32
  }
  func.func @transform_16(%arg0: i32) -> (i32, i32, i32) {
    %c0_i32 = arith.constant 0 : i32
    %c0_i32_0 = arith.constant 0 : i32
    %c0_i32_1 = arith.constant 0 : i32
    return %arg0, %c0_i32, %c0_i32_0 : i32, i32, i32
  }
  func.func @transform_17(%arg0: i32) -> (i32, i32, i32) {
    %c0_i32 = arith.constant 0 : i32
    %c0_i32_0 = arith.constant 0 : i32
    %c0_i32_1 = arith.constant 0 : i32
    return %arg0, %c0_i32, %c0_i32_0 : i32, i32, i32
  }
  func.func @transform_18(%arg0: i32) -> (i32, i32, i32) {
    %c0_i32 = arith.constant 0 : i32
    %c0_i32_0 = arith.constant 0 : i32
    %c0_i32_1 = arith.constant 0 : i32
    return %arg0, %c0_i32, %c0_i32_0 : i32, i32, i32
  }
  func.func @transform_19(%arg0: i32) -> (i32, i32, i32) {
    %c0_i32 = arith.constant 0 : i32
    %c0_i32_0 = arith.constant 0 : i32
    %c0_i32_1 = arith.constant 0 : i32
    return %arg0, %c0_i32, %c0_i32_0 : i32, i32, i32
  }
  func.func @transform_20(%arg0: i32) -> (i32, i32, i32) {
    %c0_i32 = arith.constant 0 : i32
    %c0_i32_0 = arith.constant 0 : i32
    %c0_i32_1 = arith.constant 0 : i32
    return %arg0, %c0_i32, %c0_i32_0 : i32, i32, i32
  }
  func.func @transform_21(%arg0: i32) -> (i32, i32) {
    %c0_i32 = arith.constant 0 : i32
    %c0_i32_0 = arith.constant 0 : i32
    %c0_i32_1 = arith.constant 0 : i32
    return %c0_i32, %c0_i32_0 : i32, i32
  }
}

</mosaic_0001>

<llo_original>
// kernel: roberta_regressor_forward.1
$region0: #{roberta_regressor_forward.1}
  #allocation0 [shape = 'u32[]', space=smem, size = 0x4, offset = 0x4, fixed_abs, tag = 'smem constant byte address 0x4 - core index']
  #allocation1 [shape = 'u32[72,128]{1,0:T(1,128)}', space=vmem, size = 0x9000, scoped, tag = 'internal scratch']
  #allocation2 [shape = 'f32[16,32]{1,0:T(8,128)}', space=vmem, size = 0x2000, scoped, tag = 'scratch operand']
  #allocation3 [shape = 'f32[1,1]{1,0:T(1,128)S(1)}', space=vmem, size = 0x200, scoped, tag = 'scoped memory for roberta_regressor_forward.1']
  %s0 = inlined_call_operand.vmem [shape: f32[16,32], index: 0, kind: input, shape index: {}]
  %s1 = inlined_call_operand.vmem [shape: f32[2,8], index: 1, kind: input, shape index: {}]
  %s2 = inlined_call_operand.vmem [shape: f32[4,32], index: 2, kind: input, shape index: {}]
  %s3 = inlined_call_operand.vmem [shape: f32[1,32], index: 3, kind: input, shape index: {}]
  %s4 = inlined_call_operand.vmem [shape: f32[1,32], index: 4, kind: input, shape index: {}]
  %s5 = inlined_call_operand.vmem [shape: f32[32,128], index: 5, kind: input, shape index: {}]
  %s6 = inlined_call_operand.vmem [shape: f32[1,128], index: 6, kind: input, shape index: {}]
  %s7 = inlined_call_operand.vmem [shape: f32[1,128], index: 7, kind: input, shape index: {}]
  %s8 = inlined_call_operand.<no memory space> [shape: f32[1,1], index: 8, kind: input, shape index: {}]
  %s9 = inlined_call_operand.vmem [shape: bf16[2,32,96], index: 9, kind: input, shape index: {}]
  %s10 = inlined_call_operand.vmem [shape: f32[2,1,96], index: 10, kind: input, shape index: {}]
  %s11 = inlined_call_operand.vmem [shape: bf16[2,32,32], index: 11, kind: input, shape index: {}]
  %s12 = inlined_call_operand.vmem [shape: f32[2,1,32], index: 12, kind: input, shape index: {}]
  %s13 = inlined_call_operand.vmem [shape: f32[2,1,32], index: 13, kind: input, shape index: {}]
  %s14 = inlined_call_operand.vmem [shape: f32[2,1,32], index: 14, kind: input, shape index: {}]
  %s15 = inlined_call_operand.vmem [shape: bf16[2,32,64], index: 15, kind: input, shape index: {}]
  %s16 = inlined_call_operand.vmem [shape: f32[2,1,64], index: 16, kind: input, shape index: {}]
  %s17 = inlined_call_operand.vmem [shape: bf16[2,64,32], index: 17, kind: input, shape index: {}]
  %s18 = inlined_call_operand.vmem [shape: f32[2,1,32], index: 18, kind: input, shape index: {}]
  %s19 = inlined_call_operand.vmem [shape: f32[2,1,32], index: 19, kind: input, shape index: {}]
  %s20 = inlined_call_operand.vmem [shape: f32[2,1,32], index: 20, kind: input, shape index: {}]
  %s21 = inlined_call_operand.vmem [shape: f32[2,1], index: 21, kind: output, shape index: {}]
  %s22 = sld [smem:[#allocation0]]
  $region125: #{roberta_regressor_forward.1} parent=0
    _
  %s24 = ssub.s32 1, %s22
  %s25 = scalar_select 0, %s24, %s22
  %v26 = vstv %s8
  %27 = vst [vmem:[#allocation3] sm:$0x1] %v26
  loop: start=0, step=1, limit=4
  $region2: #{roberta_regressor_forward.1} parent=0 // loop_pre_header
    _
  $region3: #{roberta_regressor_forward.1} parent=0 // loop_header
    %s29 = sphi 0, %s33
    %p30 = scmp.ge.s32.totalorder %s29, 4
    %s37 = sphi 0, %s37
    %s39 = sphi 0, %s37
    %s40 = sphi 0, %s39
    %s54 = sphi 0, %s40
    %s58 = sphi 0, %s58
    %s60 = sphi 0, %s58
    %s61 = sphi 0, %s60
    %s75 = sphi 0, %s61
    %s79 = sphi 0, %s79
    %s81 = sphi 0, %s79
    %s82 = sphi 0, %s81
    %s96 = sphi 0, %s82
    %s100 = sphi 0, %s100
    %s102 = sphi 0, %s100
    %s103 = sphi 0, %s102
    %s117 = sphi 0, %s103
    %s121 = sphi 0, %s121
    %s123 = sphi 0, %s121
    %s124 = sphi 0, %s123
    %s138 = sphi 0, %s124
    %s142 = sphi 0, %s142
    %s144 = sphi 0, %s142
    %s145 = sphi 0, %s144
    %s159 = sphi 0, %s145
    %s163 = sphi 0, %s163
    %s165 = sphi 0, %s163
    %s166 = sphi 0, %s165
    %s180 = sphi 0, %s166
    %s184 = sphi 0, %s184
    %s186 = sphi 0, %s184
    %s187 = sphi 0, %s186
    %s201 = sphi 0, %s187
    %s205 = sphi 0, %s205
    %s207 = sphi 0, %s205
    %s208 = sphi 0, %s207
    %s222 = sphi 0, %s208
    %s228 = sphi 0, %s230
    %s231 = sphi 0, %s228
    %s232 = sphi 0, %s231
    %s248 = sphi 0, %s232
    %s254 = sphi 0, %s256
    %s257 = sphi 0, %s254
    %s258 = sphi 0, %s257
    %s274 = sphi 0, %s258
    %s280 = sphi 0, %s282
    %s283 = sphi 0, %s280
    %s284 = sphi 0, %s283
    %s300 = sphi 0, %s284
    %s306 = sphi 0, %s308
    %s309 = sphi 0, %s306
    %s310 = sphi 0, %s309
    %s326 = sphi 0, %s310
    %s332 = sphi 0, %s334
    %s335 = sphi 0, %s332
    %s336 = sphi 0, %s335
    %s352 = sphi 0, %s336
    %s358 = sphi 0, %s360
    %s361 = sphi 0, %s358
    %s362 = sphi 0, %s361
    %s378 = sphi 0, %s362
    %s384 = sphi 0, %s386
    %s387 = sphi 0, %s384
    %s388 = sphi 0, %s387
    %s404 = sphi 0, %s388
    %s410 = sphi 0, %s412
    %s413 = sphi 0, %s410
    %s414 = sphi 0, %s413
    %s430 = sphi 0, %s414
    %s436 = sphi 0, %s438
    %s439 = sphi 0, %s436
    %s440 = sphi 0, %s439
    %s456 = sphi 0, %s440
    %s462 = sphi 0, %s464
    %s465 = sphi 0, %s462
    %s466 = sphi 0, %s465
    %s482 = sphi 0, %s466
    %s488 = sphi 0, %s490
    %s491 = sphi 0, %s488
    %s492 = sphi 0, %s491
    %s508 = sphi 0, %s492
    %s514 = sphi 0, %s516
    %s517 = sphi 0, %s514
    %s518 = sphi 0, %s517
    %s534 = sphi 0, %s518
    %s538 = sphi 0, %s538
    %s540 = sphi 0, %s538
    %s541 = sphi 0, %s540
    %s555 = sphi 0, %s541
  $region4: #{roberta_regressor_forward.1} parent=0 // loop_header_branch
    %32 = sbr.rel (%p30) target = $region8
  $region5: #{roberta_regressor_forward.1} parent=0 // loop_body
    %s34 = ssub.s32 %s29, 1
    %s35 = ssub.s32 %s29, 2
    %s36 = sadd.s32 %s29, 1
    %s38 = sadd.s32 %s37, 1
    %p41 = scmp.eq.s32.totalorder %s29, 1
    %p42 = scmp.ne.s32.totalorder %s37, %s39
    %p43 = scmp.eq.s32.totalorder %s29, 0
    %p44 = por %p42, %p43
    %p45 = scmp.ne.s32.totalorder %s37, %s39
    %p46 = scmp.eq.s32.totalorder %s34, 1
    %p47 = por %p45, %p46
    %p48 = scmp.ne.s32.totalorder %s39, %s40
    %p49 = scmp.eq.s32.totalorder %s34, 0
    %p50 = por %p48, %p49
    %p51 = scmp.ne.s32.totalorder %s39, %s40
    %p52 = scmp.eq.s32.totalorder %s35, 1
    %p53 = por %p51, %p52
    %p55 = scmp.ne.s32.totalorder %s40, %s54
    %p56 = scmp.eq.s32.totalorder %s35, 0
    %p57 = por %p55, %p56
    %s59 = sadd.s32 %s58, 1
    %p62 = scmp.eq.s32.totalorder %s29, 1
    %p63 = scmp.ne.s32.totalorder %s58, %s60
    %p64 = scmp.eq.s32.totalorder %s29, 0
    %p65 = por %p63, %p64
    %p66 = scmp.ne.s32.totalorder %s58, %s60
    %p67 = scmp.eq.s32.totalorder %s34, 1
    %p68 = por %p66, %p67
    %p69 = scmp.ne.s32.totalorder %s60, %s61
    %p70 = scmp.eq.s32.totalorder %s34, 0
    %p71 = por %p69, %p70
    %p72 = scmp.ne.s32.totalorder %s60, %s61
    %p73 = scmp.eq.s32.totalorder %s35, 1
    %p74 = por %p72, %p73
    %p76 = scmp.ne.s32.totalorder %s61, %s75
    %p77 = scmp.eq.s32.totalorder %s35, 0
    %p78 = por %p76, %p77
    %s80 = sadd.s32 %s79, 1
    %p83 = scmp.eq.s32.totalorder %s29, 1
    %p84 = scmp.ne.s32.totalorder %s79, %s81
    %p85 = scmp.eq.s32.totalorder %s29, 0
    %p86 = por %p84, %p85
    %p87 = scmp.ne.s32.totalorder %s79, %s81
    %p88 = scmp.eq.s32.totalorder %s34, 1
    %p89 = por %p87, %p88
    %p90 = scmp.ne.s32.totalorder %s81, %s82
    %p91 = scmp.eq.s32.totalorder %s34, 0
    %p92 = por %p90, %p91
    %p93 = scmp.ne.s32.totalorder %s81, %s82
    %p94 = scmp.eq.s32.totalorder %s35, 1
    %p95 = por %p93, %p94
    %p97 = scmp.ne.s32.totalorder %s82, %s96
    %p98 = scmp.eq.s32.totalorder %s35, 0
    %p99 = por %p97, %p98
    %s101 = sadd.s32 %s100, 1
    %p104 = scmp.eq.s32.totalorder %s29, 1
    %p105 = scmp.ne.s32.totalorder %s100, %s102
    %p106 = scmp.eq.s32.totalorder %s29, 0
    %p107 = por %p105, %p106
    %p108 = scmp.ne.s32.totalorder %s100, %s102
    %p109 = scmp.eq.s32.totalorder %s34, 1
    %p110 = por %p108, %p109
    %p111 = scmp.ne.s32.totalorder %s102, %s103
    %p112 = scmp.eq.s32.totalorder %s34, 0
    %p113 = por %p111, %p112
    %p114 = scmp.ne.s32.totalorder %s102, %s103
    %p115 = scmp.eq.s32.totalorder %s35, 1
    %p116 = por %p114, %p115
    %p118 = scmp.ne.s32.totalorder %s103, %s117
    %p119 = scmp.eq.s32.totalorder %s35, 0
    %p120 = por %p118, %p119
    %s122 = sadd.s32 %s121, 1
    %p125 = scmp.eq.s32.totalorder %s29, 1
    %p126 = scmp.ne.s32.totalorder %s121, %s123
    %p127 = scmp.eq.s32.totalorder %s29, 0
    %p128 = por %p126, %p127
    %p129 = scmp.ne.s32.totalorder %s121, %s123
    %p130 = scmp.eq.s32.totalorder %s34, 1
    %p131 = por %p129, %p130
    %p132 = scmp.ne.s32.totalorder %s123, %s124
    %p133 = scmp.eq.s32.totalorder %s34, 0
    %p134 = por %p132, %p133
    %p135 = scmp.ne.s32.totalorder %s123, %s124
    %p136 = scmp.eq.s32.totalorder %s35, 1
    %p137 = por %p135, %p136
    %p139 = scmp.ne.s32.totalorder %s124, %s138
    %p140 = scmp.eq.s32.totalorder %s35, 0
    %p141 = por %p139, %p140
    %s143 = sadd.s32 %s142, 1
    %p146 = scmp.eq.s32.totalorder %s29, 1
    %p147 = scmp.ne.s32.totalorder %s142, %s144
    %p148 = scmp.eq.s32.totalorder %s29, 0
    %p149 = por %p147, %p148
    %p150 = scmp.ne.s32.totalorder %s142, %s144
    %p151 = scmp.eq.s32.totalorder %s34, 1
    %p152 = por %p150, %p151
    %p153 = scmp.ne.s32.totalorder %s144, %s145
    %p154 = scmp.eq.s32.totalorder %s34, 0
    %p155 = por %p153, %p154
    %p156 = scmp.ne.s32.totalorder %s144, %s145
    %p157 = scmp.eq.s32.totalorder %s35, 1
    %p158 = por %p156, %p157
    %p160 = scmp.ne.s32.totalorder %s145, %s159
    %p161 = scmp.eq.s32.totalorder %s35, 0
    %p162 = por %p160, %p161
    %s164 = sadd.s32 %s163, 1
    %p167 = scmp.eq.s32.totalorder %s29, 1
    %p168 = scmp.ne.s32.totalorder %s163, %s165
    %p169 = scmp.eq.s32.totalorder %s29, 0
    %p170 = por %p168, %p169
    %p171 = scmp.ne.s32.totalorder %s163, %s165
    %p172 = scmp.eq.s32.totalorder %s34, 1
    %p173 = por %p171, %p172
    %p174 = scmp.ne.s32.totalorder %s165, %s166
    %p175 = scmp.eq.s32.totalorder %s34, 0
    %p176 = por %p174, %p175
    %p177 = scmp.ne.s32.totalorder %s165, %s166
    %p178 = scmp.eq.s32.totalorder %s35, 1
    %p179 = por %p177, %p178
    %p181 = scmp.ne.s32.totalorder %s166, %s180
    %p182 = scmp.eq.s32.totalorder %s35, 0
    %p183 = por %p181, %p182
    %s185 = sadd.s32 %s184, 1
    %p188 = scmp.eq.s32.totalorder %s29, 1
    %p189 = scmp.ne.s32.totalorder %s184, %s186
    %p190 = scmp.eq.s32.totalorder %s29, 0
    %p191 = por %p189, %p190
    %p192 = scmp.ne.s32.totalorder %s184, %s186
    %p193 = scmp.eq.s32.totalorder %s34, 1
    %p194 = por %p192, %p193
    %p195 = scmp.ne.s32.totalorder %s186, %s187
    %p196 = scmp.eq.s32.totalorder %s34, 0
    %p197 = por %p195, %p196
    %p198 = scmp.ne.s32.totalorder %s186, %s187
    %p199 = scmp.eq.s32.totalorder %s35, 1
    %p200 = por %p198, %p199
    %p202 = scmp.ne.s32.totalorder %s187, %s201
    %p203 = scmp.eq.s32.totalorder %s35, 0
    %p204 = por %p202, %p203
    %s206 = sadd.s32 %s205, 1
    %p209 = scmp.eq.s32.totalorder %s29, 1
    %p210 = scmp.ne.s32.totalorder %s205, %s207
    %p211 = scmp.eq.s32.totalorder %s29, 0
    %p212 = por %p210, %p211
    %p213 = scmp.ne.s32.totalorder %s205, %s207
    %p214 = scmp.eq.s32.totalorder %s34, 1
    %p215 = por %p213, %p214
    %p216 = scmp.ne.s32.totalorder %s207, %s208
    %p217 = scmp.eq.s32.totalorder %s34, 0
    %p218 = por %p216, %p217
    %p219 = scmp.ne.s32.totalorder %s207, %s208
    %p220 = scmp.eq.s32.totalorder %s35, 1
    %p221 = por %p219, %p220
    %p223 = scmp.ne.s32.totalorder %s208, %s222
    %p224 = scmp.eq.s32.totalorder %s35, 0
    %p225 = por %p223, %p224
    %s226 = ssub.s32 %s29, %s36
    %p227 = scmp.eq.s32.totalorder %s226, 0
    %s229 = sadd.s32 %s228, 1
    %s230 = scalar_select %p227, %s228, %s229
    %p233 = pneg %p227
    %p234 = scmp.eq.s32.totalorder %s29, 1
    %p235 = por %p233, %p234
    %p236 = scmp.ne.s32.totalorder %s228, %s231
    %p237 = scmp.eq.s32.totalorder %s29, 0
    %p238 = por %p236, %p237
    %p239 = scmp.ne.s32.totalorder %s228, %s231
    %p240 = scmp.eq.s32.totalorder %s34, 1
    %p241 = por %p239, %p240
    %p242 = scmp.ne.s32.totalorder %s231, %s232
    %p243 = scmp.eq.s32.totalorder %s34, 0
    %p244 = por %p242, %p243
    %p245 = scmp.ne.s32.totalorder %s231, %s232
    %p246 = scmp.eq.s32.totalorder %s35, 1
    %p247 = por %p245, %p246
    %p249 = scmp.ne.s32.totalorder %s232, %s248
    %p250 = scmp.eq.s32.totalorder %s35, 0
    %p251 = por %p249, %p250
    %s252 = ssub.s32 %s29, %s36
    %p253 = scmp.eq.s32.totalorder %s252, 0
    %s255 = sadd.s32 %s254, 1
    %s256 = scalar_select %p253, %s254, %s255
    %p259 = pneg %p253
    %p260 = scmp.eq.s32.totalorder %s29, 1
    %p261 = por %p259, %p260
    %p262 = scmp.ne.s32.totalorder %s254, %s257
    %p263 = scmp.eq.s32.totalorder %s29, 0
    %p264 = por %p262, %p263
    %p265 = scmp.ne.s32.totalorder %s254, %s257
    %p266 = scmp.eq.s32.totalorder %s34, 1
    %p267 = por %p265, %p266
    %p268 = scmp.ne.s32.totalorder %s257, %s258
    %p269 = scmp.eq.s32.totalorder %s34, 0
    %p270 = por %p268, %p269
    %p271 = scmp.ne.s32.totalorder %s257, %s258
    %p272 = scmp.eq.s32.totalorder %s35, 1
    %p273 = por %p271, %p272
    %p275 = scmp.ne.s32.totalorder %s258, %s274
    %p276 = scmp.eq.s32.totalorder %s35, 0
    %p277 = por %p275, %p276
    %s278 = ssub.s32 %s29, %s36
    %p279 = scmp.eq.s32.totalorder %s278, 0
    %s281 = sadd.s32 %s280, 1
    %s282 = scalar_select %p279, %s280, %s281
    %p285 = pneg %p279
    %p286 = scmp.eq.s32.totalorder %s29, 1
    %p287 = por %p285, %p286
    %p288 = scmp.ne.s32.totalorder %s280, %s283
    %p289 = scmp.eq.s32.totalorder %s29, 0
    %p290 = por %p288, %p289
    %p291 = scmp.ne.s32.totalorder %s280, %s283
    %p292 = scmp.eq.s32.totalorder %s34, 1
    %p293 = por %p291, %p292
    %p294 = scmp.ne.s32.totalorder %s283, %s284
    %p295 = scmp.eq.s32.totalorder %s34, 0
    %p296 = por %p294, %p295
    %p297 = scmp.ne.s32.totalorder %s283, %s284
    %p298 = scmp.eq.s32.totalorder %s35, 1
    %p299 = por %p297, %p298
    %p301 = scmp.ne.s32.totalorder %s284, %s300
    %p302 = scmp.eq.s32.totalorder %s35, 0
    %p303 = por %p301, %p302
    %s304 = ssub.s32 %s29, %s36
    %p305 = scmp.eq.s32.totalorder %s304, 0
    %s307 = sadd.s32 %s306, 1
    %s308 = scalar_select %p305, %s306, %s307
    %p311 = pneg %p305
    %p312 = scmp.eq.s32.totalorder %s29, 1
    %p313 = por %p311, %p312
    %p314 = scmp.ne.s32.totalorder %s306, %s309
    %p315 = scmp.eq.s32.totalorder %s29, 0
    %p316 = por %p314, %p315
    %p317 = scmp.ne.s32.totalorder %s306, %s309
    %p318 = scmp.eq.s32.totalorder %s34, 1
    %p319 = por %p317, %p318
    %p320 = scmp.ne.s32.totalorder %s309, %s310
    %p321 = scmp.eq.s32.totalorder %s34, 0
    %p322 = por %p320, %p321
    %p323 = scmp.ne.s32.totalorder %s309, %s310
    %p324 = scmp.eq.s32.totalorder %s35, 1
    %p325 = por %p323, %p324
    %p327 = scmp.ne.s32.totalorder %s310, %s326
    %p328 = scmp.eq.s32.totalorder %s35, 0
    %p329 = por %p327, %p328
    %s330 = ssub.s32 %s29, %s36
    %p331 = scmp.eq.s32.totalorder %s330, 0
    %s333 = sadd.s32 %s332, 1
    %s334 = scalar_select %p331, %s332, %s333
    %p337 = pneg %p331
    %p338 = scmp.eq.s32.totalorder %s29, 1
    %p339 = por %p337, %p338
    %p340 = scmp.ne.s32.totalorder %s332, %s335
    %p341 = scmp.eq.s32.totalorder %s29, 0
    %p342 = por %p340, %p341
    %p343 = scmp.ne.s32.totalorder %s332, %s335
    %p344 = scmp.eq.s32.totalorder %s34, 1
    %p345 = por %p343, %p344
    %p346 = scmp.ne.s32.totalorder %s335, %s336
    %p347 = scmp.eq.s32.totalorder %s34, 0
    %p348 = por %p346, %p347
    %p349 = scmp.ne.s32.totalorder %s335, %s336
    %p350 = scmp.eq.s32.totalorder %s35, 1
    %p351 = por %p349, %p350
    %p353 = scmp.ne.s32.totalorder %s336, %s352
    %p354 = scmp.eq.s32.totalorder %s35, 0
    %p355 = por %p353, %p354
    %s356 = ssub.s32 %s29, %s36
    %p357 = scmp.eq.s32.totalorder %s356, 0
    %s359 = sadd.s32 %s358, 1
    %s360 = scalar_select %p357, %s358, %s359
    %p363 = pneg %p357
    %p364 = scmp.eq.s32.totalorder %s29, 1
    %p365 = por %p363, %p364
    %p366 = scmp.ne.s32.totalorder %s358, %s361
    %p367 = scmp.eq.s32.totalorder %s29, 0
    %p368 = por %p366, %p367
    %p369 = scmp.ne.s32.totalorder %s358, %s361
    %p370 = scmp.eq.s32.totalorder %s34, 1
    %p371 = por %p369, %p370
    %p372 = scmp.ne.s32.totalorder %s361, %s362
    %p373 = scmp.eq.s32.totalorder %s34, 0
    %p374 = por %p372, %p373
    %p375 = scmp.ne.s32.totalorder %s361, %s362
    %p376 = scmp.eq.s32.totalorder %s35, 1
    %p377 = por %p375, %p376
    %p379 = scmp.ne.s32.totalorder %s362, %s378
    %p380 = scmp.eq.s32.totalorder %s35, 0
    %p381 = por %p379, %p380
    %s382 = ssub.s32 %s29, %s36
    %p383 = scmp.eq.s32.totalorder %s382, 0
    %s385 = sadd.s32 %s384, 1
    %s386 = scalar_select %p383, %s384, %s385
    %p389 = pneg %p383
    %p390 = scmp.eq.s32.totalorder %s29, 1
    %p391 = por %p389, %p390
    %p392 = scmp.ne.s32.totalorder %s384, %s387
    %p393 = scmp.eq.s32.totalorder %s29, 0
    %p394 = por %p392, %p393
    %p395 = scmp.ne.s32.totalorder %s384, %s387
    %p396 = scmp.eq.s32.totalorder %s34, 1
    %p397 = por %p395, %p396
    %p398 = scmp.ne.s32.totalorder %s387, %s388
    %p399 = scmp.eq.s32.totalorder %s34, 0
    %p400 = por %p398, %p399
    %p401 = scmp.ne.s32.totalorder %s387, %s388
    %p402 = scmp.eq.s32.totalorder %s35, 1
    %p403 = por %p401, %p402
    %p405 = scmp.ne.s32.totalorder %s388, %s404
    %p406 = scmp.eq.s32.totalorder %s35, 0
    %p407 = por %p405, %p406
    %s408 = ssub.s32 %s29, %s36
    %p409 = scmp.eq.s32.totalorder %s408, 0
    %s411 = sadd.s32 %s410, 1
    %s412 = scalar_select %p409, %s410, %s411
    %p415 = pneg %p409
    %p416 = scmp.eq.s32.totalorder %s29, 1
    %p417 = por %p415, %p416
    %p418 = scmp.ne.s32.totalorder %s410, %s413
    %p419 = scmp.eq.s32.totalorder %s29, 0
    %p420 = por %p418, %p419
    %p421 = scmp.ne.s32.totalorder %s410, %s413
    %p422 = scmp.eq.s32.totalorder %s34, 1
    %p423 = por %p421, %p422
    %p424 = scmp.ne.s32.totalorder %s413, %s414
    %p425 = scmp.eq.s32.totalorder %s34, 0
    %p426 = por %p424, %p425
    %p427 = scmp.ne.s32.totalorder %s413, %s414
    %p428 = scmp.eq.s32.totalorder %s35, 1
    %p429 = por %p427, %p428
    %p431 = scmp.ne.s32.totalorder %s414, %s430
    %p432 = scmp.eq.s32.totalorder %s35, 0
    %p433 = por %p431, %p432
    %s434 = ssub.s32 %s29, %s36
    %p435 = scmp.eq.s32.totalorder %s434, 0
    %s437 = sadd.s32 %s436, 1
    %s438 = scalar_select %p435, %s436, %s437
    %p441 = pneg %p435
    %p442 = scmp.eq.s32.totalorder %s29, 1
    %p443 = por %p441, %p442
    %p444 = scmp.ne.s32.totalorder %s436, %s439
    %p445 = scmp.eq.s32.totalorder %s29, 0
    %p446 = por %p444, %p445
    %p447 = scmp.ne.s32.totalorder %s436, %s439
    %p448 = scmp.eq.s32.totalorder %s34, 1
    %p449 = por %p447, %p448
    %p450 = scmp.ne.s32.totalorder %s439, %s440
    %p451 = scmp.eq.s32.totalorder %s34, 0
    %p452 = por %p450, %p451
    %p453 = scmp.ne.s32.totalorder %s439, %s440
    %p454 = scmp.eq.s32.totalorder %s35, 1
    %p455 = por %p453, %p454
    %p457 = scmp.ne.s32.totalorder %s440, %s456
    %p458 = scmp.eq.s32.totalorder %s35, 0
    %p459 = por %p457, %p458
    %s460 = ssub.s32 %s29, %s36
    %p461 = scmp.eq.s32.totalorder %s460, 0
    %s463 = sadd.s32 %s462, 1
    %s464 = scalar_select %p461, %s462, %s463
    %p467 = pneg %p461
    %p468 = scmp.eq.s32.totalorder %s29, 1
    %p469 = por %p467, %p468
    %p470 = scmp.ne.s32.totalorder %s462, %s465
    %p471 = scmp.eq.s32.totalorder %s29, 0
    %p472 = por %p470, %p471
    %p473 = scmp.ne.s32.totalorder %s462, %s465
    %p474 = scmp.eq.s32.totalorder %s34, 1
    %p475 = por %p473, %p474
    %p476 = scmp.ne.s32.totalorder %s465, %s466
    %p477 = scmp.eq.s32.totalorder %s34, 0
    %p478 = por %p476, %p477
    %p479 = scmp.ne.s32.totalorder %s465, %s466
    %p480 = scmp.eq.s32.totalorder %s35, 1
    %p481 = por %p479, %p480
    %p483 = scmp.ne.s32.totalorder %s466, %s482
    %p484 = scmp.eq.s32.totalorder %s35, 0
    %p485 = por %p483, %p484
    %s486 = ssub.s32 %s29, %s36
    %p487 = scmp.eq.s32.totalorder %s486, 0
    %s489 = sadd.s32 %s488, 1
    %s490 = scalar_select %p487, %s488, %s489
    %p493 = pneg %p487
    %p494 = scmp.eq.s32.totalorder %s29, 1
    %p495 = por %p493, %p494
    %p496 = scmp.ne.s32.totalorder %s488, %s491
    %p497 = scmp.eq.s32.totalorder %s29, 0
    %p498 = por %p496, %p497
    %p499 = scmp.ne.s32.totalorder %s488, %s491
    %p500 = scmp.eq.s32.totalorder %s34, 1
    %p501 = por %p499, %p500
    %p502 = scmp.ne.s32.totalorder %s491, %s492
    %p503 = scmp.eq.s32.totalorder %s34, 0
    %p504 = por %p502, %p503
    %p505 = scmp.ne.s32.totalorder %s491, %s492
    %p506 = scmp.eq.s32.totalorder %s35, 1
    %p507 = por %p505, %p506
    %p509 = scmp.ne.s32.totalorder %s492, %s508
    %p510 = scmp.eq.s32.totalorder %s35, 0
    %p511 = por %p509, %p510
    %s512 = ssub.s32 %s29, %s36
    %p513 = scmp.eq.s32.totalorder %s512, 0
    %s515 = sadd.s32 %s514, 1
    %s516 = scalar_select %p513, %s514, %s515
    %p519 = pneg %p513
    %p520 = scmp.eq.s32.totalorder %s29, 1
    %p521 = por %p519, %p520
    %p522 = scmp.ne.s32.totalorder %s514, %s517
    %p523 = scmp.eq.s32.totalorder %s29, 0
    %p524 = por %p522, %p523
    %p525 = scmp.ne.s32.totalorder %s514, %s517
    %p526 = scmp.eq.s32.totalorder %s34, 1
    %p527 = por %p525, %p526
    %p528 = scmp.ne.s32.totalorder %s517, %s518
    %p529 = scmp.eq.s32.totalorder %s34, 0
    %p530 = por %p528, %p529
    %p531 = scmp.ne.s32.totalorder %s517, %s518
    %p532 = scmp.eq.s32.totalorder %s35, 1
    %p533 = por %p531, %p532
    %p535 = scmp.ne.s32.totalorder %s518, %s534
    %p536 = scmp.eq.s32.totalorder %s35, 0
    %p537 = por %p535, %p536
    %s539 = sadd.s32 %s538, 1
    %p542 = scmp.eq.s32.totalorder %s29, 1
    %p543 = scmp.ne.s32.totalorder %s538, %s540
    %p544 = scmp.eq.s32.totalorder %s29, 0
    %p545 = por %p543, %p544
    %p546 = scmp.ne.s32.totalorder %s538, %s540
    %p547 = scmp.eq.s32.totalorder %s34, 1
    %p548 = por %p546, %p547
    %p549 = scmp.ne.s32.totalorder %s540, %s541
    %p550 = scmp.eq.s32.totalorder %s34, 0
    %p551 = por %p549, %p550
    %p552 = scmp.ne.s32.totalorder %s540, %s541
    %p553 = scmp.eq.s32.totalorder %s35, 1
    %p554 = por %p552, %p553
    %p556 = scmp.ne.s32.totalorder %s541, %s555
    %p557 = scmp.eq.s32.totalorder %s35, 0
    %p558 = por %p556, %p557
    %p559 = scmp.le.s32.totalorder 1, %s29
    %p560 = scmp.lt.s32.totalorder %s29, 3
    %p561 = pnand %p559, %p560
    %p562 = pneg %p561
    // Predicated region
    $region9: #{roberta_regressor_forward.1} parent=5 // pred_check
      _
    $region10: #{roberta_regressor_forward.1} parent=5 // pred_check_branch
      %564 = sbr.rel (%p561) target = $region12
    $region11: #{roberta_regressor_forward.1} parent=5 // pred_region
      %s565 = ssub.s32 %s29, 1
      // Predicated region
      $region13: #{roberta_regressor_forward.1} parent=11 // pred_check
        %p566 = pneg %p50
      $region14: #{roberta_regressor_forward.1} parent=11 // pred_check_branch
        %568 = sbr.rel (%p566) target = $region16
      $region15: #{roberta_regressor_forward.1} parent=11 // pred_region
        _
      $region16: #{roberta_regressor_forward.1} parent=11 // pred_fallthru
        _
      // Predicated region
      $region17: #{roberta_regressor_forward.1} parent=11 // pred_check
        %p569 = pneg %p71
      $region18: #{roberta_regressor_forward.1} parent=11 // pred_check_branch
        %571 = sbr.rel (%p569) target = $region20
      $region19: #{roberta_regressor_forward.1} parent=11 // pred_region
        _
      $region20: #{roberta_regressor_forward.1} parent=11 // pred_fallthru
        _
      // Predicated region
      $region21: #{roberta_regressor_forward.1} parent=11 // pred_check
        %p572 = pneg %p92
      $region22: #{roberta_regressor_forward.1} parent=11 // pred_check_branch
        %574 = sbr.rel (%p572) target = $region24
      $region23: #{roberta_regressor_forward.1} parent=11 // pred_region
        _
      $region24: #{roberta_regressor_forward.1} parent=11 // pred_fallthru
        _
      // Predicated region
      $region25: #{roberta_regressor_forward.1} parent=11 // pred_check
        %p575 = pneg %p113
      $region26: #{roberta_regressor_forward.1} parent=11 // pred_check_branch
        %577 = sbr.rel (%p575) target = $region28
      $region27: #{roberta_regressor_forward.1} parent=11 // pred_region
        _
      $region28: #{roberta_regressor_forward.1} parent=11 // pred_fallthru
        _
      // Predicated region
      $region29: #{roberta_regressor_forward.1} parent=11 // pred_check
        %p578 = pneg %p134
      $region30: #{roberta_regressor_forward.1} parent=11 // pred_check_branch
        %580 = sbr.rel (%p578) target = $region32
      $region31: #{roberta_regressor_forward.1} parent=11 // pred_region
        _
      $region32: #{roberta_regressor_forward.1} parent=11 // pred_fallthru
        _
      // Predicated region
      $region33: #{roberta_regressor_forward.1} parent=11 // pred_check
        %p581 = pneg %p155
      $region34: #{roberta_regressor_forward.1} parent=11 // pred_check_branch
        %583 = sbr.rel (%p581) target = $region36
      $region35: #{roberta_regressor_forward.1} parent=11 // pred_region
        _
      $region36: #{roberta_regressor_forward.1} parent=11 // pred_fallthru
        _
      // Predicated region
      $region37: #{roberta_regressor_forward.1} parent=11 // pred_check
        %p584 = pneg %p176
      $region38: #{roberta_regressor_forward.1} parent=11 // pred_check_branch
        %586 = sbr.rel (%p584) target = $region40
      $region39: #{roberta_regressor_forward.1} parent=11 // pred_region
        _
      $region40: #{roberta_regressor_forward.1} parent=11 // pred_fallthru
        _
      // Predicated region
      $region41: #{roberta_regressor_forward.1} parent=11 // pred_check
        %p587 = pneg %p197
      $region42: #{roberta_regressor_forward.1} parent=11 // pred_check_branch
        %589 = sbr.rel (%p587) target = $region44
      $region43: #{roberta_regressor_forward.1} parent=11 // pred_region
        _
      $region44: #{roberta_regressor_forward.1} parent=11 // pred_fallthru
        _
      // Predicated region
      $region45: #{roberta_regressor_forward.1} parent=11 // pred_check
        %p590 = pneg %p218
      $region46: #{roberta_regressor_forward.1} parent=11 // pred_check_branch
        %592 = sbr.rel (%p590) target = $region48
      $region47: #{roberta_regressor_forward.1} parent=11 // pred_region
        _
      $region48: #{roberta_regressor_forward.1} parent=11 // pred_fallthru
        _
    $region12: #{roberta_regressor_forward.1} parent=5 // pred_fallthru
      _
    %p593 = scmp.lt.s32.totalorder %s29, 2
    // Predicated region
    $region49: #{roberta_regressor_forward.1} parent=5 // pred_check
      %p594 = pneg %p593
    $region50: #{roberta_regressor_forward.1} parent=5 // pred_check_branch
      %596 = sbr.rel (%p594) target = $region52
    $region51: #{roberta_regressor_forward.1} parent=5 // pred_region
      // Predicated region
      $region53: #{roberta_regressor_forward.1} parent=51 // pred_check
        %p597 = pneg %p238
      $region54: #{roberta_regressor_forward.1} parent=51 // pred_check_branch
        %599 = sbr.rel (%p597) target = $region56
      $region55: #{roberta_regressor_forward.1} parent=51 // pred_region
        %p600 = scmp.lt.s32.totalorder %s29, 1
        %s601 = scalar_select %p600, %s29, 1
        %s602 = smul.addr %s601, 4
        %s603 = smul.addr %s602, 4
        %s604 = scalar_lea.vmem %s9, %s603
      $region56: #{roberta_regressor_forward.1} parent=51 // pred_fallthru
        _
      // Predicated region
      $region57: #{roberta_regressor_forward.1} parent=51 // pred_check
        %p605 = pneg %p264
      $region58: #{roberta_regressor_forward.1} parent=51 // pred_check_branch
        %607 = sbr.rel (%p605) target = $region60
      $region59: #{roberta_regressor_forward.1} parent=51 // pred_region
        %p608 = scmp.lt.s32.totalorder %s29, 1
        %s609 = scalar_select %p608, %s29, 1
        %s610 = scalar_lea.vmem %s10, %s609
      $region60: #{roberta_regressor_forward.1} parent=51 // pred_fallthru
        _
      // Predicated region
      $region61: #{roberta_regressor_forward.1} parent=51 // pred_check
        %p611 = pneg %p290
      $region62: #{roberta_regressor_forward.1} parent=51 // pred_check_branch
        %613 = sbr.rel (%p611) target = $region64
      $region63: #{roberta_regressor_forward.1} parent=51 // pred_region
        %p614 = scmp.lt.s32.totalorder %s29, 1
        %s615 = scalar_select %p614, %s29, 1
        %s616 = smul.addr %s615, 4
        %s617 = smul.addr %s616, 4
        %s618 = scalar_lea.vmem %s11, %s617
      $region64: #{roberta_regressor_forward.1} parent=51 // pred_fallthru
        _
      // Predicated region
      $region65: #{roberta_regressor_forward.1} parent=51 // pred_check
        %p619 = pneg %p316
      $region66: #{roberta_regressor_forward.1} parent=51 // pred_check_branch
        %621 = sbr.rel (%p619) target = $region68
      $region67: #{roberta_regressor_forward.1} parent=51 // pred_region
        %p622 = scmp.lt.s32.totalorder %s29, 1
        %s623 = scalar_select %p622, %s29, 1
        %s624 = scalar_lea.vmem %s12, %s623
      $region68: #{roberta_regressor_forward.1} parent=51 // pred_fallthru
        _
      // Predicated region
      $region69: #{roberta_regressor_forward.1} parent=51 // pred_check
        %p625 = pneg %p342
      $region70: #{roberta_regressor_forward.1} parent=51 // pred_check_branch
        %627 = sbr.rel (%p625) target = $region72
      $region71: #{roberta_regressor_forward.1} parent=51 // pred_region
        %p628 = scmp.lt.s32.totalorder %s29, 1
        %s629 = scalar_select %p628, %s29, 1
        %s630 = scalar_lea.vmem %s13, %s629
      $region72: #{roberta_regressor_forward.1} parent=51 // pred_fallthru
        _
      // Predicated region
      $region73: #{roberta_regressor_forward.1} parent=51 // pred_check
        %p631 = pneg %p368
      $region74: #{roberta_regressor_forward.1} parent=51 // pred_check_branch
        %633 = sbr.rel (%p631) target = $region76
      $region75: #{roberta_regressor_forward.1} parent=51 // pred_region
        %p634 = scmp.lt.s32.totalorder %s29, 1
        %s635 = scalar_select %p634, %s29, 1
        %s636 = scalar_lea.vmem %s14, %s635
      $region76: #{roberta_regressor_forward.1} parent=51 // pred_fallthru
        _
      // Predicated region
      $region77: #{roberta_regressor_forward.1} parent=51 // pred_check
        %p637 = pneg %p394
      $region78: #{roberta_regressor_forward.1} parent=51 // pred_check_branch
        %639 = sbr.rel (%p637) target = $region80
      $region79: #{roberta_regressor_forward.1} parent=51 // pred_region
        %p640 = scmp.lt.s32.totalorder %s29, 1
        %s641 = scalar_select %p640, %s29, 1
        %s642 = smul.addr %s641, 4
        %s643 = smul.addr %s642, 4
        %s644 = scalar_lea.vmem %s15, %s643
      $region80: #{roberta_regressor_forward.1} parent=51 // pred_fallthru
        _
      // Predicated region
      $region81: #{roberta_regressor_forward.1} parent=51 // pred_check
        %p645 = pneg %p420
      $region82: #{roberta_regressor_forward.1} parent=51 // pred_check_branch
        %647 = sbr.rel (%p645) target = $region84
      $region83: #{roberta_regressor_forward.1} parent=51 // pred_region
        %p648 = scmp.lt.s32.totalorder %s29, 1
        %s649 = scalar_select %p648, %s29, 1
        %s650 = scalar_lea.vmem %s16, %s649
      $region84: #{roberta_regressor_forward.1} parent=51 // pred_fallthru
        _
      // Predicated region
      $region85: #{roberta_regressor_forward.1} parent=51 // pred_check
        %p651 = pneg %p446
      $region86: #{roberta_regressor_forward.1} parent=51 // pred_check_branch
        %653 = sbr.rel (%p651) target = $region88
      $region87: #{roberta_regressor_forward.1} parent=51 // pred_region
        %p654 = scmp.lt.s32.totalorder %s29, 1
        %s655 = scalar_select %p654, %s29, 1
        %s656 = smul.addr %s655, 8
        %s657 = smul.addr %s656, 4
        %s658 = scalar_lea.vmem %s17, %s657
      $region88: #{roberta_regressor_forward.1} parent=51 // pred_fallthru
        _
      // Predicated region
      $region89: #{roberta_regressor_forward.1} parent=51 // pred_check
        %p659 = pneg %p472
      $region90: #{roberta_regressor_forward.1} parent=51 // pred_check_branch
        %661 = sbr.rel (%p659) target = $region92
      $region91: #{roberta_regressor_forward.1} parent=51 // pred_region
        %p662 = scmp.lt.s32.totalorder %s29, 1
        %s663 = scalar_select %p662, %s29, 1
        %s664 = scalar_lea.vmem %s18, %s663
      $region92: #{roberta_regressor_forward.1} parent=51 // pred_fallthru
        _
      // Predicated region
      $region93: #{roberta_regressor_forward.1} parent=51 // pred_check
        %p665 = pneg %p498
      $region94: #{roberta_regressor_forward.1} parent=51 // pred_check_branch
        %667 = sbr.rel (%p665) target = $region96
      $region95: #{roberta_regressor_forward.1} parent=51 // pred_region
        %p668 = scmp.lt.s32.totalorder %s29, 1
        %s669 = scalar_select %p668, %s29, 1
        %s670 = scalar_lea.vmem %s19, %s669
      $region96: #{roberta_regressor_forward.1} parent=51 // pred_fallthru
        _
      // Predicated region
      $region97: #{roberta_regressor_forward.1} parent=51 // pred_check
        %p671 = pneg %p524
      $region98: #{roberta_regressor_forward.1} parent=51 // pred_check_branch
        %673 = sbr.rel (%p671) target = $region100
      $region99: #{roberta_regressor_forward.1} parent=51 // pred_region
        %p674 = scmp.lt.s32.totalorder %s29, 1
        %s675 = scalar_select %p674, %s29, 1
        %s676 = scalar_lea.vmem %s20, %s675
      $region100: #{roberta_regressor_forward.1} parent=51 // pred_fallthru
        _
    $region52: #{roberta_regressor_forward.1} parent=5 // pred_fallthru
      _
    %p677 = scmp.le.s32.totalorder 1, %s29
    %p678 = scmp.lt.s32.totalorder %s29, 3
    %p679 = pnand %p677, %p678
    %p680 = pneg %p679
    // Predicated region
    $region101: #{roberta_regressor_forward.1} parent=5 // pred_check
      _
    $region102: #{roberta_regressor_forward.1} parent=5 // pred_check_branch
      %682 = sbr.rel (%p679) target = $region104
    $region103: #{roberta_regressor_forward.1} parent=5 // pred_region
      %s683 = ssub.s32 %s29, 1
      %p684 = pneg %p50
      %p685 = pneg %p47
      %p686 = pneg %p71
      %p687 = pneg %p68
      %p688 = pneg %p92
      %p689 = pneg %p89
      %p690 = pneg %p113
      %p691 = pneg %p110
      %p692 = pneg %p134
      %p693 = pneg %p131
      %p694 = pneg %p155
      %p695 = pneg %p152
      %p696 = pneg %p176
      %p697 = pneg %p173
      %p698 = pneg %p197
      %p699 = pneg %p194
      %p700 = pneg %p218
      %p701 = pneg %p215
      %p702 = scmp.lt.s32.totalorder %s34, 1
      %s703 = scalar_select %p702, %s34, 1
      %s704 = smul.addr %s703, 4
      %s705 = smul.addr %s704, 4
      %s706 = scalar_lea.vmem %s9, %s705
      %p707 = pneg %p244
      %p708 = pneg %p241
      %p709 = scmp.lt.s32.totalorder %s34, 1
      %s710 = scalar_select %p709, %s34, 1
      %s711 = scalar_lea.vmem %s10, %s710
      %p712 = pneg %p270
      %p713 = pneg %p267
      %p714 = scmp.lt.s32.totalorder %s34, 1
      %s715 = scalar_select %p714, %s34, 1
      %s716 = smul.addr %s715, 4
      %s717 = smul.addr %s716, 4
      %s718 = scalar_lea.vmem %s11, %s717
      %p719 = pneg %p296
      %p720 = pneg %p293
      %p721 = scmp.lt.s32.totalorder %s34, 1
      %s722 = scalar_select %p721, %s34, 1
      %s723 = scalar_lea.vmem %s12, %s722
      %p724 = pneg %p322
      %p725 = pneg %p319
      %p726 = scmp.lt.s32.totalorder %s34, 1
      %s727 = scalar_select %p726, %s34, 1
      %s728 = scalar_lea.vmem %s13, %s727
      %p729 = pneg %p348
      %p730 = pneg %p345
      %p731 = scmp.lt.s32.totalorder %s34, 1
      %s732 = scalar_select %p731, %s34, 1
      %s733 = scalar_lea.vmem %s14, %s732
      %p734 = pneg %p374
      %p735 = pneg %p371
      %p736 = scmp.lt.s32.totalorder %s34, 1
      %s737 = scalar_select %p736, %s34, 1
      %s738 = smul.addr %s737, 4
      %s739 = smul.addr %s738, 4
      %s740 = scalar_lea.vmem %s15, %s739
      %p741 = pneg %p400
      %p742 = pneg %p397
      %p743 = scmp.lt.s32.totalorder %s34, 1
      %s744 = scalar_select %p743, %s34, 1
      %s745 = scalar_lea.vmem %s16, %s744
      %p746 = pneg %p426
      %p747 = pneg %p423
      %p748 = scmp.lt.s32.totalorder %s34, 1
      %s749 = scalar_select %p748, %s34, 1
      %s750 = smul.addr %s749, 8
      %s751 = smul.addr %s750, 4
      %s752 = scalar_lea.vmem %s17, %s751
      %p753 = pneg %p452
      %p754 = pneg %p449
      %p755 = scmp.lt.s32.totalorder %s34, 1
      %s756 = scalar_select %p755, %s34, 1
      %s757 = scalar_lea.vmem %s18, %s756
      %p758 = pneg %p478
      %p759 = pneg %p475
      %p760 = scmp.lt.s32.totalorder %s34, 1
      %s761 = scalar_select %p760, %s34, 1
      %s762 = scalar_lea.vmem %s19, %s761
      %p763 = pneg %p504
      %p764 = pneg %p501
      %p765 = scmp.lt.s32.totalorder %s34, 1
      %s766 = scalar_select %p765, %s34, 1
      %s767 = scalar_lea.vmem %s20, %s766
      %p768 = pneg %p530
      %p769 = pneg %p527
      %p770 = pneg %p551
      %p771 = pneg %p548
      %p772 = scmp.lt.s32.totalorder %s34, 1
      %s773 = scalar_select %p772, %s34, 1
      %s774 = smul.addr %s773, 4
      %s775 = smul.addr %s774, 4
      %s776 = scalar_lea.vmem %s9, %s775
      %p777 = scmp.lt.s32.totalorder %s34, 1
      %s778 = scalar_select %p777, %s34, 1
      %s779 = scalar_lea.vmem %s10, %s778
      %p780 = scmp.lt.s32.totalorder %s34, 1
      %s781 = scalar_select %p780, %s34, 1
      %s782 = smul.addr %s781, 4
      %s783 = smul.addr %s782, 4
      %s784 = scalar_lea.vmem %s11, %s783
      %p785 = scmp.lt.s32.totalorder %s34, 1
      %s786 = scalar_select %p785, %s34, 1
      %s787 = scalar_lea.vmem %s12, %s786
      %p788 = scmp.lt.s32.totalorder %s34, 1
      %s789 = scalar_select %p788, %s34, 1
      %s790 = scalar_lea.vmem %s13, %s789
      %p791 = scmp.lt.s32.totalorder %s34, 1
      %s792 = scalar_select %p791, %s34, 1
      %s793 = scalar_lea.vmem %s14, %s792
      %p794 = scmp.lt.s32.totalorder %s34, 1
      %s795 = scalar_select %p794, %s34, 1
      %s796 = smul.addr %s795, 4
      %s797 = smul.addr %s796, 4
      %s798 = scalar_lea.vmem %s15, %s797
      %p799 = scmp.lt.s32.totalorder %s34, 1
      %s800 = scalar_select %p799, %s34, 1
      %s801 = scalar_lea.vmem %s16, %s800
      %p802 = scmp.lt.s32.totalorder %s34, 1
      %s803 = scalar_select %p802, %s34, 1
      %s804 = smul.addr %s803, 8
      %s805 = smul.addr %s804, 4
      %s806 = scalar_lea.vmem %s17, %s805
      %p807 = scmp.lt.s32.totalorder %s34, 1
      %s808 = scalar_select %p807, %s34, 1
      %s809 = scalar_lea.vmem %s18, %s808
      %p810 = scmp.lt.s32.totalorder %s34, 1
      %s811 = scalar_select %p810, %s34, 1
      %s812 = scalar_lea.vmem %s19, %s811
      %p813 = scmp.lt.s32.totalorder %s34, 1
      %s814 = scalar_select %p813, %s34, 1
      %s815 = scalar_lea.vmem %s20, %s814
      %p817 = scmp.eq.s32.totalorder %s34, 0
      // Predicated region
      $region105: #{roberta_regressor_forward.1} parent=103 // pred_check
        %p818 = pneg %p817
      $region106: #{roberta_regressor_forward.1} parent=103 // pred_check_branch
        %820 = sbr.rel (%p818) target = $region108
      $region107: #{roberta_regressor_forward.1} parent=103 // pred_region
        %v821 = vld [vmem:[%s0] sm:$0xff]
        %v822 = vld [vmem:[%s0 + $0x8] sm:$0xff]
        %v823 = vld [vmem:[%s3] sm:$0x1]
        %v824 = vld [vmem:[%s4] sm:$0x1]
        %vm825 = vcmask 261120
        %v826 = vsel %vm825, %v821, 0.0
        %827 = vadd.xlane.f32.xlu0 %v826
        %v828 = vpop.xlane.xlu0 %827
        %v829 = vsel %vm825, %v822, 0.0
        %830 = vadd.xlane.f32.xlu0 %v829
        %v831 = vpop.xlane.xlu0 %830
        %v832 = vrcp.pop 32.0
        %v833 = vmul.f32 32.0, %v832
        %v834 = vsub.f32 1.0, %v833
        %v835 = vmul.f32 %v832, %v834
        %v836 = vadd.f32 %v832, %v835
        %vm837 = vweird.f32 %v832
        %v838 = vsel %vm837, %v832, %v836
        %v839 = vmul.f32 %v828, %v838
        %v840 = vmul.f32 %v831, %v838
        %v841 = vsub.f32 %v821, %v839
        %v842 = vsub.f32 %v822, %v840
        %v843 = vmul.f32 %v841, %v841
        %v844 = vmul.f32 %v842, %v842
        %v845 = vsel %vm825, %v843, 0.0
        %846 = vadd.xlane.f32.xlu0 %v845
        %v847 = vpop.xlane.xlu0 %846
        %v848 = vsel %vm825, %v844, 0.0
        %849 = vadd.xlane.f32.xlu0 %v848
        %v850 = vpop.xlane.xlu0 %849
        %v851 = vmul.f32 %v847, %v838
        %v852 = vmul.f32 %v850, %v838
        %v853 = vadd.f32 %v851, 1e-05
        %v854 = vadd.f32 %v852, 1e-05
        %v855 = vrsqrt.pop %v853
        %v856 = vmul.f32 %v855, %v853
        %v857 = vmul.f32 %v856, %v855
        %v858 = vmul.f32 0.5, %v857
        %v859 = vsub.f32 1.5, %v858
        %v860 = vmul.f32 %v855, %v859
        %vm861 = vweird.f32 %v853
        %vm862 = vweird.f32 %v855
        %vm863 = vmor %vm861, %vm862
        %v864 = vsel %vm863, %v855, %v860
        %v865 = vrsqrt.pop %v854
        %v866 = vmul.f32 %v865, %v854
        %v867 = vmul.f32 %v866, %v865
        %v868 = vmul.f32 0.5, %v867
        %v869 = vsub.f32 1.5, %v868
        %v870 = vmul.f32 %v865, %v869
        %vm871 = vweird.f32 %v854
        %vm872 = vweird.f32 %v865
        %vm873 = vmor %vm871, %vm872
        %v874 = vsel %vm873, %v865, %v870
        %v875 = vmul.f32 %v841, %v864
        %v876 = vmul.f32 %v842, %v874
        %v878 = vperm.slane %v823, 0
        %v880 = vmul.f32 %v875, %v878
        %v881 = vmul.f32 %v876, %v878
        %v883 = vperm.slane %v824, 0
        %v885 = vadd.f32 %v880, %v883
        %v886 = vadd.f32 %v881, %v883
        %887 = vst.msk [vmem:[#allocation2] sm:$0xff] %vm825, %v885
        %888 = vst.msk [vmem:[#allocation2 + $0x8] sm:$0xff] %vm825, %v886
      $region108: #{roberta_regressor_forward.1} parent=103 // pred_fallthru
        _
      %v889 = vld [vmem:[#allocation2] sm:$0xff]
      %v890 = vld [vmem:[#allocation2 + $0x8] sm:$0xff]
      %v891 = vpack.c.bf16 %v890, %v889
      %v892 = vld [vmem:[%s776] sm:$0xf]
      %v893 = vld [vmem:[%s776 + $0x4] sm:$0xf]
      %v894 = vld [vmem:[%s776 + $0x8] sm:$0xf]
      %v895 = vld [vmem:[%s776 + $0xc] sm:$0xf]
      %v896 = vld [vmem:[%s779] sm:$0x1]
      %v898 = vperm.slane %v896, 0
      %v904 = vunpack.c.l.b16 %v892
      %v905 = vunpack.c.l.b16 %v893
      %v906 = vunpack.c.l.b16 %v894
      %v907 = vunpack.c.l.b16 %v895
      %v908 = vpack.c.b16 %v905, %v904
      %v909 = vpack.c.b16 %v907, %v906
      %vm912 = vcmask 261120
      %v914 = vsel %vm912, %v891, 0
      %916 = vmatpush.bf16.msra.mxu0 0
      %917 = vmatpush.bf16.msra.mxu0 0
      %918 = vmatpush.bf16.msra.mxu0 0
      %919 = vmatpush.bf16.msra.mxu0 0
      %920 = vmatpush.bf16.msra.mxu0 0
      %921 = vmatpush.bf16.msra.mxu0 0
      %922 = vmatpush.bf16.msra.mxu0 %v909
      %923 = vmatpush.bf16.msra.mxu0 %v908
      %924 = vmatmul.bf16.gmra.mxu0 %v914
      %v925 = vpop.f32.mrf.mxu0
      %v926 = vadd.f32 %v898, %v925
      %v927 = vpop.f32.mrf.mxu0
      %v928 = vadd.f32 %v898, %v927
      %929 = vdwg.mxu0
      %v930 = vpack.c.bf16 %v926, %v926
      %v931 = vld [vmem:[%s1] sm:$0x1]
      %v932 = vld [vmem:[%s2] sm:$0x1]
      %v933 = vperm.slane %v932, 0
      %v934 = vmul.f32 %v926, %v933
      %v935 = vpack.c.bf16 %v934, %v934
      %937 = vrot.lane.b32.xlu0 %v930, 96
      %v938 = vpop.permute.xlu0 %937
      %v940 = vsel %vm912, %v935, 0
      %v943 = vsel %vm912, %v938, 0
      %945 = vmatpush.bf16.xpose.msra.mxu0 0
      %946 = vmatpush.bf16.xpose.msra.mxu0 0
      %947 = vmatpush.bf16.xpose.msra.mxu0 0
      %948 = vmatpush.bf16.xpose.msra.mxu0 0
      %949 = vmatpush.bf16.xpose.msra.mxu0 0
      %950 = vmatpush.bf16.xpose.msra.mxu0 0
      %951 = vmatpush.bf16.xpose.msra.mxu0 0
      %952 = vmatpush.bf16.xpose.msra.mxu0 %v943
      %953 = vmatmul.bf16.gmra.mxu0 %v940
      %v954 = vpop.f32.mrf.mxu0
      %v955 = vadd.f32 0.0, %v954
      %v956 = vpop.f32.mrf.mxu0
      %957 = vdwg.mxu0
      %v958 = vmul.f32 %v955, 0.35355338
      %v959 = vperm.slane %v931, 0
      %v960 = vadd.f32 %v958, %v959
      %vm961 = vcmask 64512
      %v962 = vsel %vm961, %v960, -inf
      %963 = vmax.xlane.f32.xlu0 %v962
      %v964 = vpop.xlane.xlu0 %963
      %v965 = vsub.f32 %v960, %v964
      %v966 = vmul.f32 %v965, 1.442695
      %v967 = vpow.pop %v966
      %v968 = vsel %vm961, %v967, 0.0
      %969 = vadd.xlane.f32.xlu0 %v968
      %v970 = vpop.xlane.xlu0 %969
      %v971 = vrcp.pop %v970
      %v972 = vmul.f32 %v967, %v971
      %974 = vrot.lane.b32.xlu0 %v933, 64
      %v975 = vpop.permute.xlu0 %974
      %v977 = vmul.f32 %v926, %v975
      %v978 = vpack.c.bf16 %v977, %v977
      %v979 = vpack.c.bf16 %v972, %v972
      %v980 = vld [vmem:[%s2 + $0x1] sm:$0x1]
      %v981 = vperm.slane %v980, 0
      %v982 = vmul.f32 %v926, %v981
      %v983 = vpack.c.bf16 %v982, %v982
      %v985 = vsel %vm912, %v983, 0
      %987 = vmatpush.bf16.xpose.msra.mxu0 0
      %988 = vmatpush.bf16.xpose.msra.mxu0 0
      %989 = vmatpush.bf16.xpose.msra.mxu0 0
      %990 = vmatpush.bf16.xpose.msra.mxu0 0
      %991 = vmatpush.bf16.xpose.msra.mxu0 0
      %992 = vmatpush.bf16.xpose.msra.mxu0 0
      %993 = vmatpush.bf16.xpose.msra.mxu0 0
      %994 = vmatpush.bf16.xpose.msra.mxu0 %v943
      %995 = vmatmul.bf16.gmra.mxu0 %v985
      %v996 = vpop.f32.mrf.mxu0
      %v997 = vadd.f32 0.0, %v996
      %v998 = vpop.f32.mrf.mxu0
      %999 = vdwg.mxu0
      %v1000 = vmul.f32 %v997, 0.35355338
      %v1001 = vadd.f32 %v1000, %v959
      %v1002 = vsel %vm961, %v1001, -inf
      %1003 = vmax.xlane.f32.xlu0 %v1002
      %v1004 = vpop.xlane.xlu0 %1003
      %v1005 = vsub.f32 %v1001, %v1004
      %v1006 = vmul.f32 %v1005, 1.442695
      %v1007 = vpow.pop %v1006
      %v1008 = vsel %vm961, %v1007, 0.0
      %1009 = vadd.xlane.f32.xlu0 %v1008
      %v1010 = vpop.xlane.xlu0 %1009
      %v1011 = vrcp.pop %v1010
      %v1012 = vmul.f32 %v1007, %v1011
      %1014 = vrot.lane.b32.xlu0 %v981, 64
      %v1015 = vpop.permute.xlu0 %1014
      %v1017 = vmul.f32 %v926, %v1015
      %v1018 = vpack.c.bf16 %v1017, %v1017
      %v1019 = vpack.c.bf16 %v1012, %v1012
      %1021 = vrot.lane.b32.xlu0 %v1018, 64
      %v1022 = vpop.permute.xlu0 %1021
      %v1024 = vsel %vm961, %v1019, 0
      %vm1026 = vcmask 1043456
      %v1028 = vsel %vm1026, %v1022, 0
      %1030 = vmatpush.bf16.msra.mxu0 0
      %1031 = vmatpush.bf16.msra.mxu0 0
      %1032 = vmatpush.bf16.msra.mxu0 0
      %1033 = vmatpush.bf16.msra.mxu0 0
      %1034 = vmatpush.bf16.msra.mxu0 0
      %1035 = vmatpush.bf16.msra.mxu0 0
      %1036 = vmatpush.bf16.msra.mxu0 0
      %1037 = vmatpush.bf16.msra.mxu0 %v1028
      %1038 = vmatmul.bf16.gmra.mxu0 %v1024
      %v1039 = vpop.f32.mrf.mxu0
      %v1040 = vadd.f32 0.0, %v1039
      %v1041 = vpop.f32.mrf.mxu0
      %1042 = vdwg.mxu0
      %1044 = vrot.lane.b32.xlu0 %v978, 64
      %v1045 = vpop.permute.xlu0 %1044
      %v1047 = vsel %vm961, %v979, 0
      %v1050 = vsel %vm1026, %v1045, 0
      %1052 = vmatpush.bf16.msra.mxu0 0
      %1053 = vmatpush.bf16.msra.mxu0 0
      %1054 = vmatpush.bf16.msra.mxu0 0
      %1055 = vmatpush.bf16.msra.mxu0 0
      %1056 = vmatpush.bf16.msra.mxu0 0
      %1057 = vmatpush.bf16.msra.mxu0 0
      %1058 = vmatpush.bf16.msra.mxu0 0
      %1059 = vmatpush.bf16.msra.mxu0 %v1050
      %1060 = vmatmul.bf16.gmra.mxu0 %v1047
      %v1061 = vpop.f32.mrf.mxu0
      %v1062 = vadd.f32 %v1040, %v1061
      %v1063 = vpop.f32.mrf.mxu0
      %1064 = vdwg.mxu0
      %v1065 = vld [vmem:[%s2 + $0x2] sm:$0x1]
      %v1066 = vperm.slane %v1065, 0
      %v1067 = vmul.f32 %v926, %v1066
      %v1068 = vpack.c.bf16 %v1067, %v1067
      %v1070 = vsel %vm912, %v1068, 0
      %1072 = vmatpush.bf16.xpose.msra.mxu0 0
      %1073 = vmatpush.bf16.xpose.msra.mxu0 0
      %1074 = vmatpush.bf16.xpose.msra.mxu0 0
      %1075 = vmatpush.bf16.xpose.msra.mxu0 0
      %1076 = vmatpush.bf16.xpose.msra.mxu0 0
      %1077 = vmatpush.bf16.xpose.msra.mxu0 0
      %1078 = vmatpush.bf16.xpose.msra.mxu0 0
      %1079 = vmatpush.bf16.xpose.msra.mxu0 %v943
      %1080 = vmatmul.bf16.gmra.mxu0 %v1070
      %v1081 = vpop.f32.mrf.mxu0
      %v1082 = vadd.f32 0.0, %v1081
      %v1083 = vpop.f32.mrf.mxu0
      %1084 = vdwg.mxu0
      %v1085 = vmul.f32 %v1082, 0.35355338
      %v1086 = vadd.f32 %v1085, %v959
      %v1087 = vsel %vm961, %v1086, -inf
      %1088 = vmax.xlane.f32.xlu0 %v1087
      %v1089 = vpop.xlane.xlu0 %1088
      %v1090 = vsub.f32 %v1086, %v1089
      %v1091 = vmul.f32 %v1090, 1.442695
      %v1092 = vpow.pop %v1091
      %v1093 = vsel %vm961, %v1092, 0.0
      %1094 = vadd.xlane.f32.xlu0 %v1093
      %v1095 = vpop.xlane.xlu0 %1094
      %v1096 = vrcp.pop %v1095
      %v1097 = vmul.f32 %v1092, %v1096
      %1099 = vrot.lane.b32.xlu0 %v1066, 64
      %v1100 = vpop.permute.xlu0 %1099
      %v1102 = vmul.f32 %v926, %v1100
      %v1103 = vpack.c.bf16 %v1102, %v1102
      %v1104 = vpack.c.bf16 %v1097, %v1097
      %1106 = vrot.lane.b32.xlu0 %v1103, 64
      %v1107 = vpop.permute.xlu0 %1106
      %v1109 = vsel %vm961, %v1104, 0
      %v1112 = vsel %vm1026, %v1107, 0
      %1114 = vmatpush.bf16.msra.mxu0 0
      %1115 = vmatpush.bf16.msra.mxu0 0
      %1116 = vmatpush.bf16.msra.mxu0 0
      %1117 = vmatpush.bf16.msra.mxu0 0
      %1118 = vmatpush.bf16.msra.mxu0 0
      %1119 = vmatpush.bf16.msra.mxu0 0
      %1120 = vmatpush.bf16.msra.mxu0 0
      %1121 = vmatpush.bf16.msra.mxu0 %v1112
      %1122 = vmatmul.bf16.gmra.mxu0 %v1109
      %v1123 = vpop.f32.mrf.mxu0
      %v1124 = vadd.f32 0.0, %v1123
      %v1125 = vpop.f32.mrf.mxu0
      %1126 = vdwg.mxu0
      %v1127 = vadd.f32 %v1062, %v1124
      %v1128 = vld [vmem:[%s2 + $0x3] sm:$0x1]
      %v1129 = vperm.slane %v1128, 0
      %v1130 = vmul.f32 %v926, %v1129
      %v1131 = vpack.c.bf16 %v1130, %v1130
      %v1133 = vsel %vm912, %v1131, 0
      %1135 = vmatpush.bf16.xpose.msra.mxu0 0
      %1136 = vmatpush.bf16.xpose.msra.mxu0 0
      %1137 = vmatpush.bf16.xpose.msra.mxu0 0
      %1138 = vmatpush.bf16.xpose.msra.mxu0 0
      %1139 = vmatpush.bf16.xpose.msra.mxu0 0
      %1140 = vmatpush.bf16.xpose.msra.mxu0 0
      %1141 = vmatpush.bf16.xpose.msra.mxu0 0
      %1142 = vmatpush.bf16.xpose.msra.mxu0 %v943
      %1143 = vmatmul.bf16.gmra.mxu0 %v1133
      %v1144 = vpop.f32.mrf.mxu0
      %v1145 = vadd.f32 0.0, %v1144
      %v1146 = vpop.f32.mrf.mxu0
      %1147 = vdwg.mxu0
      %v1148 = vmul.f32 %v1145, 0.35355338
      %v1149 = vadd.f32 %v1148, %v959
      %v1150 = vsel %vm961, %v1149, -inf
      %1151 = vmax.xlane.f32.xlu0 %v1150
      %v1152 = vpop.xlane.xlu0 %1151
      %v1153 = vsub.f32 %v1149, %v1152
      %v1154 = vmul.f32 %v1153, 1.442695
      %v1155 = vpow.pop %v1154
      %v1156 = vsel %vm961, %v1155, 0.0
      %1157 = vadd.xlane.f32.xlu0 %v1156
      %v1158 = vpop.xlane.xlu0 %1157
      %v1159 = vrcp.pop %v1158
      %v1160 = vmul.f32 %v1155, %v1159
      %1162 = vrot.lane.b32.xlu0 %v1129, 64
      %v1163 = vpop.permute.xlu0 %1162
      %v1165 = vmul.f32 %v926, %v1163
      %v1166 = vpack.c.bf16 %v1165, %v1165
      %v1167 = vpack.c.bf16 %v1160, %v1160
      %1169 = vrot.lane.b32.xlu0 %v1166, 64
      %v1170 = vpop.permute.xlu0 %1169
      %v1172 = vsel %vm961, %v1167, 0
      %v1175 = vsel %vm1026, %v1170, 0
      %1177 = vmatpush.bf16.msra.mxu0 0
      %1178 = vmatpush.bf16.msra.mxu0 0
      %1179 = vmatpush.bf16.msra.mxu0 0
      %1180 = vmatpush.bf16.msra.mxu0 0
      %1181 = vmatpush.bf16.msra.mxu0 0
      %1182 = vmatpush.bf16.msra.mxu0 0
      %1183 = vmatpush.bf16.msra.mxu0 0
      %1184 = vmatpush.bf16.msra.mxu0 %v1175
      %1185 = vmatmul.bf16.gmra.mxu0 %v1172
      %v1186 = vpop.f32.mrf.mxu0
      %v1187 = vadd.f32 0.0, %v1186
      %v1188 = vpop.f32.mrf.mxu0
      %1189 = vdwg.mxu0
      %v1190 = vadd.f32 %v1127, %v1187
      %v1191 = vpack.c.bf16 %v928, %v928
      %v1192 = vld [vmem:[%s1 + $0x1] sm:$0x1]
      %v1193 = vmul.f32 %v928, %v933
      %v1194 = vpack.c.bf16 %v1193, %v1193
      %1196 = vrot.lane.b32.xlu0 %v1191, 96
      %v1197 = vpop.permute.xlu0 %1196
      %v1199 = vsel %vm912, %v1194, 0
      %v1202 = vsel %vm912, %v1197, 0
      %1204 = vmatpush.bf16.xpose.msra.mxu0 0
      %1205 = vmatpush.bf16.xpose.msra.mxu0 0
      %1206 = vmatpush.bf16.xpose.msra.mxu0 0
      %1207 = vmatpush.bf16.xpose.msra.mxu0 0
      %1208 = vmatpush.bf16.xpose.msra.mxu0 0
      %1209 = vmatpush.bf16.xpose.msra.mxu0 0
      %1210 = vmatpush.bf16.xpose.msra.mxu0 0
      %1211 = vmatpush.bf16.xpose.msra.mxu0 %v1202
      %1212 = vmatmul.bf16.gmra.mxu0 %v1199
      %v1213 = vpop.f32.mrf.mxu0
      %v1214 = vadd.f32 0.0, %v1213
      %v1215 = vpop.f32.mrf.mxu0
      %1216 = vdwg.mxu0
      %v1217 = vmul.f32 %v1214, 0.35355338
      %v1218 = vperm.slane %v1192, 0
      %v1219 = vadd.f32 %v1217, %v1218
      %v1220 = vsel %vm961, %v1219, -inf
      %1221 = vmax.xlane.f32.xlu0 %v1220
      %v1222 = vpop.xlane.xlu0 %1221
      %v1223 = vsub.f32 %v1219, %v1222
      %v1224 = vmul.f32 %v1223, 1.442695
      %v1225 = vpow.pop %v1224
      %v1226 = vsel %vm961, %v1225, 0.0
      %1227 = vadd.xlane.f32.xlu0 %v1226
      %v1228 = vpop.xlane.xlu0 %1227
      %v1229 = vrcp.pop %v1228
      %v1230 = vmul.f32 %v1225, %v1229
      %v1231 = vmul.f32 %v928, %v975
      %v1232 = vpack.c.bf16 %v1231, %v1231
      %v1233 = vpack.c.bf16 %v1230, %v1230
      %v1234 = vmul.f32 %v928, %v981
      %v1235 = vpack.c.bf16 %v1234, %v1234
      %v1237 = vsel %vm912, %v1235, 0
      %1239 = vmatpush.bf16.xpose.msra.mxu0 0
      %1240 = vmatpush.bf16.xpose.msra.mxu0 0
      %1241 = vmatpush.bf16.xpose.msra.mxu0 0
      %1242 = vmatpush.bf16.xpose.msra.mxu0 0
      %1243 = vmatpush.bf16.xpose.msra.mxu0 0
      %1244 = vmatpush.bf16.xpose.msra.mxu0 0
      %1245 = vmatpush.bf16.xpose.msra.mxu0 0
      %1246 = vmatpush.bf16.xpose.msra.mxu0 %v1202
      %1247 = vmatmul.bf16.gmra.mxu0 %v1237
      %v1248 = vpop.f32.mrf.mxu0
      %v1249 = vadd.f32 0.0, %v1248
      %v1250 = vpop.f32.mrf.mxu0
      %1251 = vdwg.mxu0
      %v1252 = vmul.f32 %v1249, 0.35355338
      %v1253 = vadd.f32 %v1252, %v1218
      %v1254 = vsel %vm961, %v1253, -inf
      %1255 = vmax.xlane.f32.xlu0 %v1254
      %v1256 = vpop.xlane.xlu0 %1255
      %v1257 = vsub.f32 %v1253, %v1256
      %v1258 = vmul.f32 %v1257, 1.442695
      %v1259 = vpow.pop %v1258
      %v1260 = vsel %vm961, %v1259, 0.0
      %1261 = vadd.xlane.f32.xlu0 %v1260
      %v1262 = vpop.xlane.xlu0 %1261
      %v1263 = vrcp.pop %v1262
      %v1264 = vmul.f32 %v1259, %v1263
      %v1265 = vmul.f32 %v928, %v1015
      %v1266 = vpack.c.bf16 %v1265, %v1265
      %v1267 = vpack.c.bf16 %v1264, %v1264
      %1269 = vrot.lane.b32.xlu0 %v1266, 64
      %v1270 = vpop.permute.xlu0 %1269
      %v1272 = vsel %vm961, %v1267, 0
      %v1275 = vsel %vm1026, %v1270, 0
      %1277 = vmatpush.bf16.msra.mxu0 0
      %1278 = vmatpush.bf16.msra.mxu0 0
      %1279 = vmatpush.bf16.msra.mxu0 0
      %1280 = vmatpush.bf16.msra.mxu0 0
      %1281 = vmatpush.bf16.msra.mxu0 0
      %1282 = vmatpush.bf16.msra.mxu0 0
      %1283 = vmatpush.bf16.msra.mxu0 0
      %1284 = vmatpush.bf16.msra.mxu0 %v1275
      %1285 = vmatmul.bf16.gmra.mxu0 %v1272
      %v1286 = vpop.f32.mrf.mxu0
      %v1287 = vadd.f32 0.0, %v1286
      %v1288 = vpop.f32.mrf.mxu0
      %1289 = vdwg.mxu0
      %1291 = vrot.lane.b32.xlu0 %v1232, 64
      %v1292 = vpop.permute.xlu0 %1291
      %v1294 = vsel %vm961, %v1233, 0
      %v1297 = vsel %vm1026, %v1292, 0
      %1299 = vmatpush.bf16.msra.mxu0 0
      %1300 = vmatpush.bf16.msra.mxu0 0
      %1301 = vmatpush.bf16.msra.mxu0 0
      %1302 = vmatpush.bf16.msra.mxu0 0
      %1303 = vmatpush.bf16.msra.mxu0 0
      %1304 = vmatpush.bf16.msra.mxu0 0
      %1305 = vmatpush.bf16.msra.mxu0 0
      %1306 = vmatpush.bf16.msra.mxu0 %v1297
      %1307 = vmatmul.bf16.gmra.mxu0 %v1294
      %v1308 = vpop.f32.mrf.mxu0
      %v1309 = vadd.f32 %v1287, %v1308
      %v1310 = vpop.f32.mrf.mxu0
      %1311 = vdwg.mxu0
      %v1312 = vmul.f32 %v928, %v1066
      %v1313 = vpack.c.bf16 %v1312, %v1312
      %v1315 = vsel %vm912, %v1313, 0
      %1317 = vmatpush.bf16.xpose.msra.mxu0 0
      %1318 = vmatpush.bf16.xpose.msra.mxu0 0
      %1319 = vmatpush.bf16.xpose.msra.mxu0 0
      %1320 = vmatpush.bf16.xpose.msra.mxu0 0
      %1321 = vmatpush.bf16.xpose.msra.mxu0 0
      %1322 = vmatpush.bf16.xpose.msra.mxu0 0
      %1323 = vmatpush.bf16.xpose.msra.mxu0 0
      %1324 = vmatpush.bf16.xpose.msra.mxu0 %v1202
      %1325 = vmatmul.bf16.gmra.mxu0 %v1315
      %v1326 = vpop.f32.mrf.mxu0
      %v1327 = vadd.f32 0.0, %v1326
      %v1328 = vpop.f32.mrf.mxu0
      %1329 = vdwg.mxu0
      %v1330 = vmul.f32 %v1327, 0.35355338
      %v1331 = vadd.f32 %v1330, %v1218
      %v1332 = vsel %vm961, %v1331, -inf
      %1333 = vmax.xlane.f32.xlu0 %v1332
      %v1334 = vpop.xlane.xlu0 %1333
      %v1335 = vsub.f32 %v1331, %v1334
      %v1336 = vmul.f32 %v1335, 1.442695
      %v1337 = vpow.pop %v1336
      %v1338 = vsel %vm961, %v1337, 0.0
      %1339 = vadd.xlane.f32.xlu0 %v1338
      %v1340 = vpop.xlane.xlu0 %1339
      %v1341 = vrcp.pop %v1340
      %v1342 = vmul.f32 %v1337, %v1341
      %v1343 = vmul.f32 %v928, %v1100
      %v1344 = vpack.c.bf16 %v1343, %v1343
      %v1345 = vpack.c.bf16 %v1342, %v1342
      %1347 = vrot.lane.b32.xlu0 %v1344, 64
      %v1348 = vpop.permute.xlu0 %1347
      %v1350 = vsel %vm961, %v1345, 0
      %v1353 = vsel %vm1026, %v1348, 0
      %1355 = vmatpush.bf16.msra.mxu0 0
      %1356 = vmatpush.bf16.msra.mxu0 0
      %1357 = vmatpush.bf16.msra.mxu0 0
      %1358 = vmatpush.bf16.msra.mxu0 0
      %1359 = vmatpush.bf16.msra.mxu0 0
      %1360 = vmatpush.bf16.msra.mxu0 0
      %1361 = vmatpush.bf16.msra.mxu0 0
      %1362 = vmatpush.bf16.msra.mxu0 %v1353
      %1363 = vmatmul.bf16.gmra.mxu0 %v1350
      %v1364 = vpop.f32.mrf.mxu0
      %v1365 = vadd.f32 0.0, %v1364
      %v1366 = vpop.f32.mrf.mxu0
      %1367 = vdwg.mxu0
      %v1368 = vadd.f32 %v1309, %v1365
      %v1369 = vmul.f32 %v928, %v1129
      %v1370 = vpack.c.bf16 %v1369, %v1369
      %v1372 = vsel %vm912, %v1370, 0
      %1374 = vmatpush.bf16.xpose.msra.mxu0 0
      %1375 = vmatpush.bf16.xpose.msra.mxu0 0
      %1376 = vmatpush.bf16.xpose.msra.mxu0 0
      %1377 = vmatpush.bf16.xpose.msra.mxu0 0
      %1378 = vmatpush.bf16.xpose.msra.mxu0 0
      %1379 = vmatpush.bf16.xpose.msra.mxu0 0
      %1380 = vmatpush.bf16.xpose.msra.mxu0 0
      %1381 = vmatpush.bf16.xpose.msra.mxu0 %v1202
      %1382 = vmatmul.bf16.gmra.mxu0 %v1372
      %v1383 = vpop.f32.mrf.mxu0
      %v1384 = vadd.f32 0.0, %v1383
      %v1385 = vpop.f32.mrf.mxu0
      %1386 = vdwg.mxu0
      %v1387 = vmul.f32 %v1384, 0.35355338
      %v1388 = vadd.f32 %v1387, %v1218
      %v1389 = vsel %vm961, %v1388, -inf
      %1390 = vmax.xlane.f32.xlu0 %v1389
      %v1391 = vpop.xlane.xlu0 %1390
      %v1392 = vsub.f32 %v1388, %v1391
      %v1393 = vmul.f32 %v1392, 1.442695
      %v1394 = vpow.pop %v1393
      %v1395 = vsel %vm961, %v1394, 0.0
      %1396 = vadd.xlane.f32.xlu0 %v1395
      %v1397 = vpop.xlane.xlu0 %1396
      %v1398 = vrcp.pop %v1397
      %v1399 = vmul.f32 %v1394, %v1398
      %v1400 = vmul.f32 %v928, %v1163
      %v1401 = vpack.c.bf16 %v1400, %v1400
      %v1402 = vpack.c.bf16 %v1399, %v1399
      %1404 = vrot.lane.b32.xlu0 %v1401, 64
      %v1405 = vpop.permute.xlu0 %1404
      %v1407 = vsel %vm961, %v1402, 0
      %v1410 = vsel %vm1026, %v1405, 0
      %1412 = vmatpush.bf16.msra.mxu0 0
      %1413 = vmatpush.bf16.msra.mxu0 0
      %1414 = vmatpush.bf16.msra.mxu0 0
      %1415 = vmatpush.bf16.msra.mxu0 0
      %1416 = vmatpush.bf16.msra.mxu0 0
      %1417 = vmatpush.bf16.msra.mxu0 0
      %1418 = vmatpush.bf16.msra.mxu0 0
      %1419 = vmatpush.bf16.msra.mxu0 %v1410
      %1420 = vmatmul.bf16.gmra.mxu0 %v1407
      %v1421 = vpop.f32.mrf.mxu0
      %v1422 = vadd.f32 0.0, %v1421
      %v1423 = vpop.f32.mrf.mxu0
      %1424 = vdwg.mxu0
      %v1425 = vadd.f32 %v1368, %v1422
      %v1426 = vpack.c.bf16 %v1425, %v1190
      %v1427 = vld [vmem:[%s784] sm:$0xf]
      %v1428 = vld [vmem:[%s784 + $0x4] sm:$0xf]
      %v1429 = vld [vmem:[%s784 + $0x8] sm:$0xf]
      %v1430 = vld [vmem:[%s784 + $0xc] sm:$0xf]
      %v1431 = vld [vmem:[%s787] sm:$0x1]
      %v1433 = vperm.slane %v1431, 0
      %v1439 = vunpack.c.l.b16 %v1427
      %v1440 = vunpack.c.l.b16 %v1428
      %v1441 = vunpack.c.l.b16 %v1429
      %v1442 = vunpack.c.l.b16 %v1430
      %v1443 = vpack.c.b16 %v1440, %v1439
      %v1444 = vpack.c.b16 %v1442, %v1441
      %v1448 = vsel %vm912, %v1426, 0
      %1450 = vmatpush.bf16.msra.mxu0 0
      %1451 = vmatpush.bf16.msra.mxu0 0
      %1452 = vmatpush.bf16.msra.mxu0 0
      %1453 = vmatpush.bf16.msra.mxu0 0
      %1454 = vmatpush.bf16.msra.mxu0 0
      %1455 = vmatpush.bf16.msra.mxu0 0
      %1456 = vmatpush.bf16.msra.mxu0 %v1444
      %1457 = vmatpush.bf16.msra.mxu0 %v1443
      %1458 = vmatmul.bf16.gmra.mxu0 %v1448
      %v1459 = vpop.f32.mrf.mxu0
      %v1460 = vadd.f32 %v1433, %v1459
      %v1461 = vpop.f32.mrf.mxu0
      %v1462 = vadd.f32 %v1433, %v1461
      %1463 = vdwg.mxu0
      %v1464 = vadd.f32 %v1460, %v889
      %v1465 = vadd.f32 %v1462, %v890
      %v1466 = vld [vmem:[%s790] sm:$0x1]
      %v1467 = vld [vmem:[%s793] sm:$0x1]
      %v1468 = vsel %vm912, %v1464, 0.0
      %1469 = vadd.xlane.f32.xlu0 %v1468
      %v1470 = vpop.xlane.xlu0 %1469
      %v1471 = vsel %vm912, %v1465, 0.0
      %1472 = vadd.xlane.f32.xlu0 %v1471
      %v1473 = vpop.xlane.xlu0 %1472
      %v1474 = vrcp.pop 32.0
      %v1475 = vmul.f32 32.0, %v1474
      %v1476 = vsub.f32 1.0, %v1475
      %v1477 = vmul.f32 %v1474, %v1476
      %v1478 = vadd.f32 %v1474, %v1477
      %vm1479 = vweird.f32 %v1474
      %v1480 = vsel %vm1479, %v1474, %v1478
      %v1481 = vmul.f32 %v1470, %v1480
      %v1482 = vmul.f32 %v1473, %v1480
      %v1483 = vsub.f32 %v1464, %v1481
      %v1484 = vsub.f32 %v1465, %v1482
      %v1485 = vmul.f32 %v1483, %v1483
      %v1486 = vmul.f32 %v1484, %v1484
      %v1487 = vsel %vm912, %v1485, 0.0
      %1488 = vadd.xlane.f32.xlu0 %v1487
      %v1489 = vpop.xlane.xlu0 %1488
      %v1490 = vsel %vm912, %v1486, 0.0
      %1491 = vadd.xlane.f32.xlu0 %v1490
      %v1492 = vpop.xlane.xlu0 %1491
      %v1493 = vmul.f32 %v1489, %v1480
      %v1494 = vmul.f32 %v1492, %v1480
      %v1495 = vadd.f32 %v1493, 1e-05
      %v1496 = vadd.f32 %v1494, 1e-05
      %v1497 = vrsqrt.pop %v1495
      %v1498 = vmul.f32 %v1497, %v1495
      %v1499 = vmul.f32 %v1498, %v1497
      %v1500 = vmul.f32 0.5, %v1499
      %v1501 = vsub.f32 1.5, %v1500
      %v1502 = vmul.f32 %v1497, %v1501
      %vm1503 = vweird.f32 %v1495
      %vm1504 = vweird.f32 %v1497
      %vm1505 = vmor %vm1503, %vm1504
      %v1506 = vsel %vm1505, %v1497, %v1502
      %v1507 = vrsqrt.pop %v1496
      %v1508 = vmul.f32 %v1507, %v1496
      %v1509 = vmul.f32 %v1508, %v1507
      %v1510 = vmul.f32 0.5, %v1509
      %v1511 = vsub.f32 1.5, %v1510
      %v1512 = vmul.f32 %v1507, %v1511
      %vm1513 = vweird.f32 %v1496
      %vm1514 = vweird.f32 %v1507
      %vm1515 = vmor %vm1513, %vm1514
      %v1516 = vsel %vm1515, %v1507, %v1512
      %v1517 = vmul.f32 %v1483, %v1506
      %v1518 = vmul.f32 %v1484, %v1516
      %v1520 = vperm.slane %v1466, 0
      %v1522 = vmul.f32 %v1517, %v1520
      %v1523 = vmul.f32 %v1518, %v1520
      %v1525 = vperm.slane %v1467, 0
      %v1527 = vadd.f32 %v1522, %v1525
      %v1528 = vadd.f32 %v1523, %v1525
      %v1529 = vpack.c.bf16 %v1528, %v1527
      %v1530 = vld [vmem:[%s798] sm:$0xf]
      %v1531 = vld [vmem:[%s798 + $0x4] sm:$0xf]
      %v1532 = vld [vmem:[%s798 + $0x8] sm:$0xf]
      %v1533 = vld [vmem:[%s798 + $0xc] sm:$0xf]
      %v1534 = vld [vmem:[%s801] sm:$0x1]
      %v1536 = vperm.slane %v1534, 0
      %v1542 = vunpack.c.l.b16 %v1530
      %v1543 = vunpack.c.l.b16 %v1531
      %v1544 = vunpack.c.l.b16 %v1532
      %v1545 = vunpack.c.l.b16 %v1533
      %v1546 = vpack.c.b16 %v1543, %v1542
      %v1547 = vpack.c.b16 %v1545, %v1544
      %v1551 = vsel %vm912, %v1529, 0
      %1553 = vmatpush.bf16.msra.mxu0 0
      %1554 = vmatpush.bf16.msra.mxu0 0
      %1555 = vmatpush.bf16.msra.mxu0 0
      %1556 = vmatpush.bf16.msra.mxu0 0
      %1557 = vmatpush.bf16.msra.mxu0 0
      %1558 = vmatpush.bf16.msra.mxu0 0
      %1559 = vmatpush.bf16.msra.mxu0 %v1547
      %1560 = vmatpush.bf16.msra.mxu0 %v1546
      %1561 = vmatmul.bf16.gmra.mxu0 %v1551
      %v1562 = vpop.f32.mrf.mxu0
      %v1563 = vadd.f32 %v1536, %v1562
      %v1564 = vpop.f32.mrf.mxu0
      %v1565 = vadd.f32 %v1536, %v1564
      %1566 = vdwg.mxu0
      %v1567 = vmul.f32 %v1563, %v1563
      %v1568 = vmul.f32 %v1565, %v1565
      %v1569 = vmul.f32 %v1563, %v1567
      %v1570 = vmul.f32 %v1565, %v1568
      %v1571 = vmul.f32 %v1569, 0.044715
      %v1572 = vmul.f32 %v1570, 0.044715
      %v1573 = vadd.f32 %v1563, %v1571
      %v1574 = vadd.f32 %v1565, %v1572
      %v1575 = vmul.f32 %v1573, 0.7978846
      %v1576 = vmul.f32 %v1574, 0.7978846
      %v1577 = vtanh.pop %v1575
      %v1578 = vtanh.pop %v1576
      %v1579 = vadd.f32 %v1577, 1.0
      %v1580 = vadd.f32 %v1578, 1.0
      %v1581 = vmul.f32 %v1579, 0.5
      %v1582 = vmul.f32 %v1580, 0.5
      %v1583 = vmul.f32 %v1563, %v1581
      %v1584 = vmul.f32 %v1565, %v1582
      %v1585 = vpack.c.bf16 %v1584, %v1583
      %v1586 = vld [vmem:[%s806] sm:$0xf]
      %v1587 = vld [vmem:[%s806 + $0x4] sm:$0xf]
      %v1588 = vld [vmem:[%s806 + $0x8] sm:$0xf]
      %v1589 = vld [vmem:[%s806 + $0xc] sm:$0xf]
      %v1590 = vld [vmem:[%s806 + $0x10] sm:$0xf]
      %v1591 = vld [vmem:[%s806 + $0x14] sm:$0xf]
      %v1592 = vld [vmem:[%s806 + $0x18] sm:$0xf]
      %v1593 = vld [vmem:[%s806 + $0x1c] sm:$0xf]
      %v1594 = vld [vmem:[%s809] sm:$0x1]
      %v1596 = vperm.slane %v1594, 0
      %v1606 = vunpack.c.l.b16 %v1586
      %v1607 = vunpack.c.l.b16 %v1587
      %v1608 = vunpack.c.l.b16 %v1588
      %v1609 = vunpack.c.l.b16 %v1589
      %v1610 = vunpack.c.l.b16 %v1590
      %v1611 = vunpack.c.l.b16 %v1591
      %v1612 = vunpack.c.l.b16 %v1592
      %v1613 = vunpack.c.l.b16 %v1593
      %v1614 = vpack.c.b16 %v1607, %v1606
      %v1615 = vpack.c.b16 %v1609, %v1608
      %v1616 = vpack.c.b16 %v1611, %v1610
      %v1617 = vpack.c.b16 %v1613, %v1612
      %vm1622 = vcmask 523264
      %v1624 = vsel %vm1622, %v1585, 0
      %1626 = vmatpush.bf16.msra.mxu0 0
      %1627 = vmatpush.bf16.msra.mxu0 0
      %1628 = vmatpush.bf16.msra.mxu0 0
      %1629 = vmatpush.bf16.msra.mxu0 0
      %1630 = vmatpush.bf16.msra.mxu0 %v1617
      %1631 = vmatpush.bf16.msra.mxu0 %v1616
      %1632 = vmatpush.bf16.msra.mxu0 %v1615
      %1633 = vmatpush.bf16.msra.mxu0 %v1614
      %1634 = vmatmul.bf16.gmra.mxu0 %v1624
      %v1635 = vpop.f32.mrf.mxu0
      %v1636 = vadd.f32 %v1596, %v1635
      %v1637 = vpop.f32.mrf.mxu0
      %v1638 = vadd.f32 %v1596, %v1637
      %1639 = vdwg.mxu0
      %v1640 = vadd.f32 %v1636, %v1527
      %v1641 = vadd.f32 %v1638, %v1528
      %v1642 = vld [vmem:[%s812] sm:$0x1]
      %v1643 = vld [vmem:[%s815] sm:$0x1]
      %v1644 = vsel %vm912, %v1640, 0.0
      %1645 = vadd.xlane.f32.xlu0 %v1644
      %v1646 = vpop.xlane.xlu0 %1645
      %v1647 = vsel %vm912, %v1641, 0.0
      %1648 = vadd.xlane.f32.xlu0 %v1647
      %v1649 = vpop.xlane.xlu0 %1648
      %v1650 = vmul.f32 %v1646, %v1480
      %v1651 = vmul.f32 %v1649, %v1480
      %v1652 = vsub.f32 %v1640, %v1650
      %v1653 = vsub.f32 %v1641, %v1651
      %v1654 = vmul.f32 %v1652, %v1652
      %v1655 = vmul.f32 %v1653, %v1653
      %v1656 = vsel %vm912, %v1654, 0.0
      %1657 = vadd.xlane.f32.xlu0 %v1656
      %v1658 = vpop.xlane.xlu0 %1657
      %v1659 = vsel %vm912, %v1655, 0.0
      %1660 = vadd.xlane.f32.xlu0 %v1659
      %v1661 = vpop.xlane.xlu0 %1660
      %v1662 = vmul.f32 %v1658, %v1480
      %v1663 = vmul.f32 %v1661, %v1480
      %v1664 = vadd.f32 %v1662, 1e-05
      %v1665 = vadd.f32 %v1663, 1e-05
      %v1666 = vrsqrt.pop %v1664
      %v1667 = vmul.f32 %v1666, %v1664
      %v1668 = vmul.f32 %v1667, %v1666
      %v1669 = vmul.f32 0.5, %v1668
      %v1670 = vsub.f32 1.5, %v1669
      %v1671 = vmul.f32 %v1666, %v1670
      %vm1672 = vweird.f32 %v1664
      %vm1673 = vweird.f32 %v1666
      %vm1674 = vmor %vm1672, %vm1673
      %v1675 = vsel %vm1674, %v1666, %v1671
      %v1676 = vrsqrt.pop %v1665
      %v1677 = vmul.f32 %v1676, %v1665
      %v1678 = vmul.f32 %v1677, %v1676
      %v1679 = vmul.f32 0.5, %v1678
      %v1680 = vsub.f32 1.5, %v1679
      %v1681 = vmul.f32 %v1676, %v1680
      %vm1682 = vweird.f32 %v1665
      %vm1683 = vweird.f32 %v1676
      %vm1684 = vmor %vm1682, %vm1683
      %v1685 = vsel %vm1684, %v1676, %v1681
      %v1686 = vmul.f32 %v1652, %v1675
      %v1687 = vmul.f32 %v1653, %v1685
      %v1689 = vperm.slane %v1642, 0
      %v1691 = vmul.f32 %v1686, %v1689
      %v1692 = vmul.f32 %v1687, %v1689
      %v1694 = vperm.slane %v1643, 0
      %v1696 = vadd.f32 %v1691, %v1694
      %v1697 = vadd.f32 %v1692, %v1694
      %1698 = vst.msk [vmem:[#allocation2] sm:$0xff] %vm912, %v1696
      %1699 = vst.msk [vmem:[#allocation2 + $0x8] sm:$0xff] %vm912, %v1697
      %p1700 = scmp.eq.s32.totalorder %s34, 1
      // Predicated region
      $region109: #{roberta_regressor_forward.1} parent=103 // pred_check
        %p1701 = pneg %p1700
      $region110: #{roberta_regressor_forward.1} parent=103 // pred_check_branch
        %1703 = sbr.rel (%p1701) target = $region112
      $region111: #{roberta_regressor_forward.1} parent=103 // pred_region
        %v1705 = vrot.slane %v1697, 7
        %vm1707 = vcmask 1040384
        %v1708 = vsel %vm1707, %v1696, %v1705
        %v1709 = vld [vmem:[%s5] sm:$0xff]
        %v1710 = vld [vmem:[%s5 + $0x8] sm:$0xff]
        %v1711 = vld [vmem:[%s5 + $0x10] sm:$0xff]
        %v1712 = vld [vmem:[%s5 + $0x18] sm:$0xff]
        %v1713 = vld [vmem:[%s6] sm:$0x1]
        %v1715 = vperm.slane %v1713, 0
        %v1718 = vsel %vm912, %v1708, 0
        %1720 = vmatpush.msra.mxu0 0.0
        %1721 = vmatpush.msra.mxu0 0.0
        %1722 = vmatpush.msra.mxu0 0.0
        %1723 = vmatpush.msra.mxu0 0.0
        %1724 = vmatpush.msra.mxu0 0.0
        %1725 = vmatpush.msra.mxu0 0.0
        %1726 = vmatpush.msra.mxu0 0.0
        %1727 = vmatpush.msra.mxu0 0.0
        %1728 = vmatpush.msra.mxu0 0.0
        %1729 = vmatpush.msra.mxu0 0.0
        %1730 = vmatpush.msra.mxu0 0.0
        %1731 = vmatpush.msra.mxu0 0.0
        %1732 = vmatpush.msra.mxu0 %v1712
        %1733 = vmatpush.msra.mxu0 %v1711
        %1734 = vmatpush.msra.mxu0 %v1710
        %1735 = vmatpush.msra.mxu0 %v1709
        %1736 = vmatmul.f32.gmra.mxu0 %v1718
        %v1737 = vpop.f32.mrf.mxu0
        %v1738 = vadd.f32 %v1715, %v1737
        %1739 = vdwg.mxu0
        %v1740 = vmax.f32 %v1738, 0.0
        %v1741 = vld [vmem:[%s7] sm:$0x1]
        %v1743 = vperm.slane %v1741, 0
        %v1745 = vmul.f32 %v1740, %v1743
        %vm1746 = vcmask 1041408
        %v1747 = vsel %vm1746, %v1745, 0.0
        %1748 = vadd.xlane.f32.xlu0 %v1747
        %v1749 = vpop.xlane.xlu0 %1748
        %v1750 = vld [vmem:[#allocation3] sm:$0x1]
        %v1752 = vperm.slane %v1750, 0
        %v1754 = vadd.f32 %v1749, %v1752
        %vm1755 = vcmask 1024
        %1756 = vst.msk [vmem:[%s21] sm:$0x3] %vm1755, %v1754
      $region112: #{roberta_regressor_forward.1} parent=103 // pred_fallthru
        _
      // Predicated region
      $region113: #{roberta_regressor_forward.1} parent=103 // pred_check
        %p1757 = pneg %p548
      $region114: #{roberta_regressor_forward.1} parent=103 // pred_check_branch
        %1759 = sbr.rel (%p1757) target = $region116
      $region115: #{roberta_regressor_forward.1} parent=103 // pred_region
        _
      $region116: #{roberta_regressor_forward.1} parent=103 // pred_fallthru
        _
      // Predicated region
      $region117: #{roberta_regressor_forward.1} parent=103 // pred_check
        %p1760 = pneg %p548
      $region118: #{roberta_regressor_forward.1} parent=103 // pred_check_branch
        %1762 = sbr.rel (%p1760) target = $region120
      $region119: #{roberta_regressor_forward.1} parent=103 // pred_region
        _
      $region120: #{roberta_regressor_forward.1} parent=103 // pred_fallthru
        _
    $region104: #{roberta_regressor_forward.1} parent=5 // pred_fallthru
      _
    %p1763 = scmp.le.s32.totalorder 2, %s29
    // Predicated region
    $region121: #{roberta_regressor_forward.1} parent=5 // pred_check
      %p1764 = pneg %p1763
    $region122: #{roberta_regressor_forward.1} parent=5 // pred_check_branch
      %1766 = sbr.rel (%p1764) target = $region124
    $region123: #{roberta_regressor_forward.1} parent=5 // pred_region
      %s1767 = ssub.s32 %s29, 2
    $region124: #{roberta_regressor_forward.1} parent=5 // pred_fallthru
      _
  $region6: #{roberta_regressor_forward.1} parent=0 // loop_footer
    %s33 = sadd.s32 1, %s29
  $region7: #{roberta_regressor_forward.1} parent=0 // loop_footer_branch
    %28 = sbr.rel target = $region3
  $region8: #{roberta_regressor_forward.1} parent=0 // loop_exit
    _

</llo_original>
